<compile_context>
chip_gen: v7x
topology: tpu7x:2x2x1
jax: 0.10.0
libtpu: 0.0.40
codegen_flags: <defaults>
</compile_context>

<pallas_src>
import jax
import jax.numpy as jnp
from jax.experimental import pallas as pl
from jax.experimental.pallas import tpu as pltpu


def _projector_kernel(x_ref, w_ref, b_ref, ids_ref, eid_ref,
                      tok_ref, len_ref, etxt_ref, out_ref):
    tn = out_ref.shape[0]

    # --- dense float feature: Linear(F -> H), bf16 MXU, f32 accumulate ------
    lin = jnp.dot(x_ref[...].astype(jnp.bfloat16),
                  w_ref[...].astype(jnp.bfloat16),
                  preferred_element_type=jnp.float32) + b_ref[...]

    # --- int64 id feature: Embedding lookup via one-hot @ table -------------
    v_id = eid_ref.shape[0]
    id_iota = jax.lax.broadcasted_iota(jnp.int32, (tn, v_id), 1)
    id_onehot = jnp.where(ids_ref[...] == id_iota, 1.0, 0.0).astype(jnp.bfloat16)
    id_proj = jnp.dot(id_onehot, eid_ref[...].astype(jnp.bfloat16),
                      preferred_element_type=jnp.float32)

    # --- text feature: BagOfWords = (token-count matrix @ table) / length ---
    v_txt = etxt_ref.shape[0]
    n_tok = tok_ref.shape[1]
    tok = tok_ref[...]                                        # [tn, L] int32
    tok_iota = jax.lax.broadcasted_iota(jnp.int32, (tn, v_txt), 1)
    counts = jnp.zeros((tn, v_txt), jnp.float32)
    for l in range(n_tok):                                    # small static unroll
        counts = counts + jnp.where(tok[:, l:l + 1] == tok_iota, 1.0, 0.0)
    txt_sum = jnp.dot(counts.astype(jnp.bfloat16),
                      etxt_ref[...].astype(jnp.bfloat16),
                      preferred_element_type=jnp.float32)
    txt_proj = txt_sum * pl.reciprocal(len_ref[...], approx=True)

    # --- stack + sum of all projections --------------------------------------
    out_ref[...] = lin + id_proj + txt_proj


def linear_projector(x_feat, lin_w, lin_b, ids, emb_id, tokens, lengths,
                     emb_txt, *, tile_n=128):
    """Fused LinearProjector forward. Returns [N, H] float32."""
    n, f_in = x_feat.shape
    h = lin_w.shape[1]
    v_id = emb_id.shape[0]
    v_txt, _ = emb_txt.shape
    n_tok = tokens.shape[1]
    assert n % tile_n == 0, "node count must be a multiple of the row tile"

    grid = (pl.cdiv(n, tile_n),)
    return pl.pallas_call(
        _projector_kernel,
        out_shape=jax.ShapeDtypeStruct((n, h), jnp.float32),
        grid=grid,
        in_specs=[
            pl.BlockSpec((tile_n, f_in), lambda i: (i, 0)),   # x_feat
            pl.BlockSpec((f_in, h), lambda i: (0, 0)),        # linear W
            pl.BlockSpec((1, h), lambda i: (0, 0)),           # linear b
            pl.BlockSpec((tile_n, 1), lambda i: (i, 0)),      # ids
            pl.BlockSpec((v_id, h), lambda i: (0, 0)),        # id embedding
            pl.BlockSpec((tile_n, n_tok), lambda i: (i, 0)),  # tokens
            pl.BlockSpec((tile_n, 1), lambda i: (i, 0)),      # lengths
            pl.BlockSpec((v_txt, h), lambda i: (0, 0)),       # text embedding
        ],
        out_specs=pl.BlockSpec((tile_n, h), lambda i: (i, 0)),
        compiler_params=pltpu.CompilerParams(
            dimension_semantics=("parallel",)),
    )(x_feat,
      lin_w,
      lin_b.reshape(1, -1),
      ids.reshape(-1, 1).astype(jnp.int32),
      emb_id,
      tokens.astype(jnp.int32),
      lengths.reshape(-1, 1).astype(jnp.float32),
      emb_txt)


def linear_projector_ref(x_feat, lin_w, lin_b, ids, emb_id, tokens, lengths,
                         emb_txt):
    """Pure-JAX reference (same semantics as the PyTorch forward)."""
    lin = x_feat @ lin_w + lin_b[None, :]
    id_proj = emb_id[ids]
    txt_proj = emb_txt[tokens].sum(axis=1) / lengths[:, None].astype(jnp.float32)
    return lin + id_proj + txt_proj


def _xavier_uniform(key, shape, gain=1.0):
    fan_in, fan_out = shape[1], shape[0]
    bound = gain * jnp.sqrt(6.0 / (fan_in + fan_out))
    return jax.random.uniform(key, shape, jnp.float32, -bound, bound)


if __name__ == "__main__":
    # Small but lane-dense / tile-aligned shapes.
    N = 256            # nodes in the batch
    F_IN = 64          # dense float feature width
    H = 128            # hidden_dims (lane-dense)
    V_ID = 128         # id-embedding vocab (padding_idx = -1 -> row V_ID-1)
    V_TXT = 256        # text vocab
    L = 8              # max tokens per node
    PAD_TXT = 0        # vocab['<pad>']

    root = jax.random.PRNGKey(0)
    kx, kid, klen, ktok, kw, ke1, ke2 = jax.random.split(root, 7)

    # node data (the ndata dict of LinearProjector.forward)
    x_feat = jax.random.normal(kx, (N, F_IN), jnp.float32)
    ids = jax.random.randint(kid, (N,), 0, V_ID - 1, jnp.int32)
    lengths = jax.random.randint(klen, (N,), 1, L + 1, jnp.int32)
    raw_tok = jax.random.randint(ktok, (N, L), 1, V_TXT, jnp.int32)
    pos = jnp.arange(L)[None, :]
    tokens = jnp.where(pos < lengths[:, None], raw_tok, PAD_TXT)

    # parameters (Linear: xavier W, zero bias; Embeddings: xavier weight).
    lin_w = _xavier_uniform(kw, (F_IN, H))          # stored [in, out]
    lin_b = jnp.zeros((H,), jnp.float32)
    emb_id = _xavier_uniform(ke1, (V_ID, H)).at[V_ID - 1].set(0.0)   # padding_idx=-1
    emb_txt = _xavier_uniform(ke2, (V_TXT, H)).at[PAD_TXT].set(0.0)  # '<pad>' row
    # (padding rows zeroed per padding_idx intent)

    out = linear_projector(x_feat, lin_w, lin_b, ids, emb_id,
                           tokens, lengths, emb_txt)
    out = jax.block_until_ready(out)
    assert out.shape == (N, H)

    ref = linear_projector_ref(x_feat, lin_w, lin_b, ids, emb_id,
                               tokens, lengths.astype(jnp.float32), emb_txt)
    err = float(jnp.max(jnp.abs(out - ref)))
    assert err < 0.2, f"max abs err {err}"   # bf16 MXU + approx reciprocal slack

    print("KERNEL_OK")
</pallas_src>

<mosaic_0001>
module attributes {stable_mosaic.version = 11 : i64} {
  func.func @_projector_kernel(%arg0: i32, %arg1: memref<128x64xf32, #tpu.memory_space<vmem>>, %arg2: memref<64x128xf32, #tpu.memory_space<vmem>>, %arg3: memref<1x128xf32, #tpu.memory_space<vmem>>, %arg4: memref<128x1xi32, #tpu.memory_space<vmem>>, %arg5: memref<128x128xf32, #tpu.memory_space<vmem>>, %arg6: memref<128x8xi32, #tpu.memory_space<vmem>>, %arg7: memref<128x1xf32, #tpu.memory_space<vmem>>, %arg8: memref<256x128xf32, #tpu.memory_space<vmem>>, %arg9: memref<128x128xf32, #tpu.memory_space<vmem>>) attributes {dimension_semantics = [#tpu.dimension_semantics<parallel>], iteration_bounds = array<i64: 2>, scalar_prefetch = 0 : i64, scratch_operands = 0 : i64, tpu.core_type = #tpu.core_type<tc>, window_params = [{transform_indices = @transform_0, window_bounds = array<i64: 128, 64>}, {pipeline_mode = #tpu.pipeline_mode<synchronous>, transform_indices = @transform_1, window_bounds = array<i64: 64, 128>}, {pipeline_mode = #tpu.pipeline_mode<synchronous>, transform_indices = @transform_2, window_bounds = array<i64: 1, 128>}, {transform_indices = @transform_3, window_bounds = array<i64: 128, 1>}, {pipeline_mode = #tpu.pipeline_mode<synchronous>, transform_indices = @transform_4, window_bounds = array<i64: 128, 128>}, {transform_indices = @transform_5, window_bounds = array<i64: 128, 8>}, {transform_indices = @transform_6, window_bounds = array<i64: 128, 1>}, {pipeline_mode = #tpu.pipeline_mode<synchronous>, transform_indices = @transform_7, window_bounds = array<i64: 256, 128>}, {transform_indices = @transform_8, window_bounds = array<i64: 128, 128>}]} {
    %c0 = arith.constant 0 : index
    %c0_0 = arith.constant 0 : index
    %0 = vector.load %arg1[%c0, %c0_0] : memref<128x64xf32, #tpu.memory_space<vmem>>, vector<128x64xf32>
    %1 = arith.truncf %0 : vector<128x64xf32> to vector<128x64xbf16>
    %c0_1 = arith.constant 0 : index
    %c0_2 = arith.constant 0 : index
    %2 = vector.load %arg2[%c0_1, %c0_2] : memref<64x128xf32, #tpu.memory_space<vmem>>, vector<64x128xf32>
    %3 = arith.truncf %2 : vector<64x128xf32> to vector<64x128xbf16>
    %cst = arith.constant dense<0.000000e+00> : vector<128x128xf32>
    %4 = tpu.matmul %1, %3, %cst {dimension_numbers = #tpu.dot_dimension_numbers<[1], [0], [0], [1], [0, 0, 1, 1], [], []>} : vector<128x64xbf16>, vector<64x128xbf16>, vector<128x128xf32> -> vector<128x128xf32>
    %c0_3 = arith.constant 0 : index
    %c0_4 = arith.constant 0 : index
    %5 = vector.load %arg3[%c0_3, %c0_4] : memref<1x128xf32, #tpu.memory_space<vmem>>, vector<1x128xf32>
    %6 = vector.broadcast %5 : vector<1x128xf32> to vector<128x128xf32>
    %7 = arith.addf %4, %6 : vector<128x128xf32>
    %8 = tpu.iota {dimensions = array<i32: 1>} : vector<128x128xi32>
    %c0_5 = arith.constant 0 : index
    %c0_6 = arith.constant 0 : index
    %9 = vector.load %arg4[%c0_5, %c0_6] : memref<128x1xi32, #tpu.memory_space<vmem>>, vector<128x1xi32>
    %10 = vector.broadcast %9 : vector<128x1xi32> to vector<128x128xi32>
    %11 = arith.cmpi eq, %10, %8 : vector<128x128xi32>
    %cst_7 = arith.constant 1.000000e+00 : f32
    %cst_8 = arith.constant 0.000000e+00 : f32
    %12 = vector.broadcast %cst_7 : f32 to vector<128x128xf32>
    %13 = vector.broadcast %cst_8 : f32 to vector<128x128xf32>
    %14 = arith.select %11, %12, %13 : vector<128x128xi1>, vector<128x128xf32>
    %15 = arith.truncf %14 : vector<128x128xf32> to vector<128x128xbf16>
    %c0_9 = arith.constant 0 : index
    %c0_10 = arith.constant 0 : index
    %16 = vector.load %arg5[%c0_9, %c0_10] : memref<128x128xf32, #tpu.memory_space<vmem>>, vector<128x128xf32>
    %17 = arith.truncf %16 : vector<128x128xf32> to vector<128x128xbf16>
    %cst_11 = arith.constant dense<0.000000e+00> : vector<128x128xf32>
    %18 = tpu.matmul %15, %17, %cst_11 {dimension_numbers = #tpu.dot_dimension_numbers<[1], [0], [0], [1], [0, 0, 1, 1], [], []>} : vector<128x128xbf16>, vector<128x128xbf16>, vector<128x128xf32> -> vector<128x128xf32>
    %c0_12 = arith.constant 0 : index
    %c0_13 = arith.constant 0 : index
    %19 = vector.load %arg6[%c0_12, %c0_13] : memref<128x8xi32, #tpu.memory_space<vmem>>, vector<128x8xi32>
    %20 = tpu.iota {dimensions = array<i32: 1>} : vector<128x256xi32>
    %cst_14 = arith.constant 0.000000e+00 : f32
    %21 = vector.broadcast %cst_14 : f32 to vector<128x256xf32>
    %22 = vector.extract_strided_slice %19 {offsets = [0, 0], sizes = [128, 1], strides = [1, 1]} : vector<128x8xi32> to vector<128x1xi32>
    %23 = vector.broadcast %22 : vector<128x1xi32> to vector<128x256xi32>
    %24 = arith.cmpi eq, %23, %20 : vector<128x256xi32>
    %cst_15 = arith.constant 1.000000e+00 : f32
    %cst_16 = arith.constant 0.000000e+00 : f32
    %25 = vector.broadcast %cst_15 : f32 to vector<128x256xf32>
    %26 = vector.broadcast %cst_16 : f32 to vector<128x256xf32>
    %27 = arith.select %24, %25, %26 : vector<128x256xi1>, vector<128x256xf32>
    %28 = arith.addf %21, %27 : vector<128x256xf32>
    %29 = vector.extract_strided_slice %19 {offsets = [0, 1], sizes = [128, 1], strides = [1, 1]} : vector<128x8xi32> to vector<128x1xi32>
    %30 = vector.broadcast %29 : vector<128x1xi32> to vector<128x256xi32>
    %31 = arith.cmpi eq, %30, %20 : vector<128x256xi32>
    %cst_17 = arith.constant 1.000000e+00 : f32
    %cst_18 = arith.constant 0.000000e+00 : f32
    %32 = vector.broadcast %cst_17 : f32 to vector<128x256xf32>
    %33 = vector.broadcast %cst_18 : f32 to vector<128x256xf32>
    %34 = arith.select %31, %32, %33 : vector<128x256xi1>, vector<128x256xf32>
    %35 = arith.addf %28, %34 : vector<128x256xf32>
    %36 = vector.extract_strided_slice %19 {offsets = [0, 2], sizes = [128, 1], strides = [1, 1]} : vector<128x8xi32> to vector<128x1xi32>
    %37 = vector.broadcast %36 : vector<128x1xi32> to vector<128x256xi32>
    %38 = arith.cmpi eq, %37, %20 : vector<128x256xi32>
    %cst_19 = arith.constant 1.000000e+00 : f32
    %cst_20 = arith.constant 0.000000e+00 : f32
    %39 = vector.broadcast %cst_19 : f32 to vector<128x256xf32>
    %40 = vector.broadcast %cst_20 : f32 to vector<128x256xf32>
    %41 = arith.select %38, %39, %40 : vector<128x256xi1>, vector<128x256xf32>
    %42 = arith.addf %35, %41 : vector<128x256xf32>
    %43 = vector.extract_strided_slice %19 {offsets = [0, 3], sizes = [128, 1], strides = [1, 1]} : vector<128x8xi32> to vector<128x1xi32>
    %44 = vector.broadcast %43 : vector<128x1xi32> to vector<128x256xi32>
    %45 = arith.cmpi eq, %44, %20 : vector<128x256xi32>
    %cst_21 = arith.constant 1.000000e+00 : f32
    %cst_22 = arith.constant 0.000000e+00 : f32
    %46 = vector.broadcast %cst_21 : f32 to vector<128x256xf32>
    %47 = vector.broadcast %cst_22 : f32 to vector<128x256xf32>
    %48 = arith.select %45, %46, %47 : vector<128x256xi1>, vector<128x256xf32>
    %49 = arith.addf %42, %48 : vector<128x256xf32>
    %50 = vector.extract_strided_slice %19 {offsets = [0, 4], sizes = [128, 1], strides = [1, 1]} : vector<128x8xi32> to vector<128x1xi32>
    %51 = vector.broadcast %50 : vector<128x1xi32> to vector<128x256xi32>
    %52 = arith.cmpi eq, %51, %20 : vector<128x256xi32>
    %cst_23 = arith.constant 1.000000e+00 : f32
    %cst_24 = arith.constant 0.000000e+00 : f32
    %53 = vector.broadcast %cst_23 : f32 to vector<128x256xf32>
    %54 = vector.broadcast %cst_24 : f32 to vector<128x256xf32>
    %55 = arith.select %52, %53, %54 : vector<128x256xi1>, vector<128x256xf32>
    %56 = arith.addf %49, %55 : vector<128x256xf32>
    %57 = vector.extract_strided_slice %19 {offsets = [0, 5], sizes = [128, 1], strides = [1, 1]} : vector<128x8xi32> to vector<128x1xi32>
    %58 = vector.broadcast %57 : vector<128x1xi32> to vector<128x256xi32>
    %59 = arith.cmpi eq, %58, %20 : vector<128x256xi32>
    %cst_25 = arith.constant 1.000000e+00 : f32
    %cst_26 = arith.constant 0.000000e+00 : f32
    %60 = vector.broadcast %cst_25 : f32 to vector<128x256xf32>
    %61 = vector.broadcast %cst_26 : f32 to vector<128x256xf32>
    %62 = arith.select %59, %60, %61 : vector<128x256xi1>, vector<128x256xf32>
    %63 = arith.addf %56, %62 : vector<128x256xf32>
    %64 = vector.extract_strided_slice %19 {offsets = [0, 6], sizes = [128, 1], strides = [1, 1]} : vector<128x8xi32> to vector<128x1xi32>
    %65 = vector.broadcast %64 : vector<128x1xi32> to vector<128x256xi32>
    %66 = arith.cmpi eq, %65, %20 : vector<128x256xi32>
    %cst_27 = arith.constant 1.000000e+00 : f32
    %cst_28 = arith.constant 0.000000e+00 : f32
    %67 = vector.broadcast %cst_27 : f32 to vector<128x256xf32>
    %68 = vector.broadcast %cst_28 : f32 to vector<128x256xf32>
    %69 = arith.select %66, %67, %68 : vector<128x256xi1>, vector<128x256xf32>
    %70 = arith.addf %63, %69 : vector<128x256xf32>
    %71 = vector.extract_strided_slice %19 {offsets = [0, 7], sizes = [128, 1], strides = [1, 1]} : vector<128x8xi32> to vector<128x1xi32>
    %72 = vector.broadcast %71 : vector<128x1xi32> to vector<128x256xi32>
    %73 = arith.cmpi eq, %72, %20 : vector<128x256xi32>
    %cst_29 = arith.constant 1.000000e+00 : f32
    %cst_30 = arith.constant 0.000000e+00 : f32
    %74 = vector.broadcast %cst_29 : f32 to vector<128x256xf32>
    %75 = vector.broadcast %cst_30 : f32 to vector<128x256xf32>
    %76 = arith.select %73, %74, %75 : vector<128x256xi1>, vector<128x256xf32>
    %77 = arith.addf %70, %76 : vector<128x256xf32>
    %78 = arith.truncf %77 : vector<128x256xf32> to vector<128x256xbf16>
    %c0_31 = arith.constant 0 : index
    %c0_32 = arith.constant 0 : index
    %79 = vector.load %arg8[%c0_31, %c0_32] : memref<256x128xf32, #tpu.memory_space<vmem>>, vector<256x128xf32>
    %80 = arith.truncf %79 : vector<256x128xf32> to vector<256x128xbf16>
    %cst_33 = arith.constant dense<0.000000e+00> : vector<128x128xf32>
    %81 = tpu.matmul %78, %80, %cst_33 {dimension_numbers = #tpu.dot_dimension_numbers<[1], [0], [0], [1], [0, 0, 1, 1], [], []>} : vector<128x256xbf16>, vector<256x128xbf16>, vector<128x128xf32> -> vector<128x128xf32>
    %c0_34 = arith.constant 0 : index
    %c0_35 = arith.constant 0 : index
    %82 = vector.load %arg7[%c0_34, %c0_35] : memref<128x1xf32, #tpu.memory_space<vmem>>, vector<128x1xf32>
    %83 = tpu.reciprocal %82 {approx = true} : vector<128x1xf32> -> vector<128x1xf32>
    %84 = vector.broadcast %83 : vector<128x1xf32> to vector<128x128xf32>
    %85 = arith.mulf %81, %84 : vector<128x128xf32>
    %86 = arith.addf %7, %18 : vector<128x128xf32>
    %87 = arith.addf %86, %85 : vector<128x128xf32>
    %c0_36 = arith.constant 0 : index
    %c0_37 = arith.constant 0 : index
    %88 = vector.load %arg9[%c0_36, %c0_37] : memref<128x128xf32, #tpu.memory_space<vmem>>, vector<128x128xf32>
    tpu.vector_store %arg9[%c0_36, %c0_37], %87 {strides = array<i32>} : memref<128x128xf32, #tpu.memory_space<vmem>>, vector<128x128xf32>,
    return
  }
  func.func @transform_0(%arg0: i32) -> (i32, i32) {
    %c0_i32 = arith.constant 0 : i32
    %c0_i32_0 = arith.constant 0 : i32
    return %arg0, %c0_i32 : i32, i32
  }
  func.func @transform_1(%arg0: i32) -> (i32, i32) {
    %c0_i32 = arith.constant 0 : i32
    %c0_i32_0 = arith.constant 0 : i32
    %c0_i32_1 = arith.constant 0 : i32
    return %c0_i32, %c0_i32_0 : i32, i32
  }
  func.func @transform_2(%arg0: i32) -> (i32, i32) {
    %c0_i32 = arith.constant 0 : i32
    %c0_i32_0 = arith.constant 0 : i32
    %c0_i32_1 = arith.constant 0 : i32
    return %c0_i32, %c0_i32_0 : i32, i32
  }
  func.func @transform_3(%arg0: i32) -> (i32, i32) {
    %c0_i32 = arith.constant 0 : i32
    %c0_i32_0 = arith.constant 0 : i32
    return %arg0, %c0_i32 : i32, i32
  }
  func.func @transform_4(%arg0: i32) -> (i32, i32) {
    %c0_i32 = arith.constant 0 : i32
    %c0_i32_0 = arith.constant 0 : i32
    %c0_i32_1 = arith.constant 0 : i32
    return %c0_i32, %c0_i32_0 : i32, i32
  }
  func.func @transform_5(%arg0: i32) -> (i32, i32) {
    %c0_i32 = arith.constant 0 : i32
    %c0_i32_0 = arith.constant 0 : i32
    return %arg0, %c0_i32 : i32, i32
  }
  func.func @transform_6(%arg0: i32) -> (i32, i32) {
    %c0_i32 = arith.constant 0 : i32
    %c0_i32_0 = arith.constant 0 : i32
    return %arg0, %c0_i32 : i32, i32
  }
  func.func @transform_7(%arg0: i32) -> (i32, i32) {
    %c0_i32 = arith.constant 0 : i32
    %c0_i32_0 = arith.constant 0 : i32
    %c0_i32_1 = arith.constant 0 : i32
    return %c0_i32, %c0_i32_0 : i32, i32
  }
  func.func @transform_8(%arg0: i32) -> (i32, i32) {
    %c0_i32 = arith.constant 0 : i32
    %c0_i32_0 = arith.constant 0 : i32
    return %arg0, %c0_i32 : i32, i32
  }
}

</mosaic_0001>

<llo_original>
// kernel: tpu_custom_call.1
$region0: #{tpu_custom_call.1}
  #allocation0 [shape = 'u32[]', space=smem, size = 0x4, offset = 0x4, fixed_abs, tag = 'smem constant byte address 0x4 - core index']
  #allocation1 [shape = 'u32[144,128]{1,0:T(1,128)}', space=vmem, size = 0x12000, scoped, tag = 'internal scratch']
  %s0 = inlined_call_operand.vmem [shape: f32[256,64], index: 0, kind: input, shape index: {}]
  %s1 = inlined_call_operand.vmem [shape: f32[64,128], index: 1, kind: input, shape index: {}]
  %s2 = inlined_call_operand.vmem [shape: f32[1,128], index: 2, kind: input, shape index: {}]
  %s3 = inlined_call_operand.vmem [shape: s32[256,1], index: 3, kind: input, shape index: {}]
  %s4 = inlined_call_operand.vmem [shape: f32[128,128], index: 4, kind: input, shape index: {}]
  %s5 = inlined_call_operand.vmem [shape: s32[256,8], index: 5, kind: input, shape index: {}]
  %s6 = inlined_call_operand.vmem [shape: f32[256,1], index: 6, kind: input, shape index: {}]
  %s7 = inlined_call_operand.vmem [shape: f32[256,128], index: 7, kind: input, shape index: {}]
  %s8 = inlined_call_operand.hbm [shape: f32[256,128], index: 8, kind: output, shape index: {}]
  %s9 = sld [smem:[#allocation0]]
  $region65: #{tpu_custom_call.1} parent=0
    _
  %s11 = ssub.s32 1, %s9
  %s12 = scalar_select 0, %s11, %s9
  $region1: #{tpu_custom_call.1} parent=0
    #allocation2 [shape = 'u8[131072]{0}', space=vmem, size = 0x20000, scoped, tag = 'output window, operand 0']
    #allocation3 [shape = 's32[2]{0}', space=sflag, size = 0x8, scoped, tag = 'scoped memory for tpu_custom_call.1']
    %13 = vsyncpa [#allocation3], 0
    %s14 = scalar_lea.sflag [#allocation3], 1
    %15 = vsyncpa %s14, 0
    loop: start=0, step=1, limit=4
    $region2: #{tpu_custom_call.1} parent=1 // loop_pre_header
      _
    $region3: #{tpu_custom_call.1} parent=1 // loop_header
      %s17 = sphi 0, %s21
      %p18 = scmp.ge.s32.totalorder %s17, 4
      %s27 = sphi 0, %s29
      %s30 = sphi 0, %s27
      %s31 = sphi 0, %s30
      %s47 = sphi 0, %s31
      %s51 = sphi 0, %s51
      %s53 = sphi 0, %s51
      %s54 = sphi 0, %s53
      %s68 = sphi 0, %s54
      %s72 = sphi 0, %s72
      %s74 = sphi 0, %s72
      %s75 = sphi 0, %s74
      %s89 = sphi 0, %s75
      %s95 = sphi 0, %s97
      %s98 = sphi 0, %s95
      %s99 = sphi 0, %s98
      %s115 = sphi 0, %s99
      %s119 = sphi 0, %s119
      %s121 = sphi 0, %s119
      %s122 = sphi 0, %s121
      %s136 = sphi 0, %s122
      %s142 = sphi 0, %s144
      %s145 = sphi 0, %s142
      %s146 = sphi 0, %s145
      %s162 = sphi 0, %s146
      %s168 = sphi 0, %s170
      %s171 = sphi 0, %s168
      %s172 = sphi 0, %s171
      %s188 = sphi 0, %s172
      %s192 = sphi 0, %s192
      %s194 = sphi 0, %s192
      %s195 = sphi 0, %s194
      %s209 = sphi 0, %s195
      %s215 = sphi 0, %s217
      %s218 = sphi 0, %s215
      %s219 = sphi 0, %s218
      %s235 = sphi 0, %s219
    $region4: #{tpu_custom_call.1} parent=1 // loop_header_branch
      %20 = sbr.rel (%p18) target = $region8
    $region5: #{tpu_custom_call.1} parent=1 // loop_body
      %s22 = ssub.s32 %s17, 1
      %s23 = ssub.s32 %s17, 2
      %s24 = sadd.s32 %s17, 1
      %s25 = ssub.s32 %s17, %s24
      %p26 = scmp.eq.s32.totalorder %s25, 0
      %s28 = sadd.s32 %s27, 1
      %s29 = scalar_select %p26, %s27, %s28
      %p32 = pneg %p26
      %p33 = scmp.eq.s32.totalorder %s17, 1
      %p34 = por %p32, %p33
      %p35 = scmp.ne.s32.totalorder %s27, %s30
      %p36 = scmp.eq.s32.totalorder %s17, 0
      %p37 = por %p35, %p36
      %p38 = scmp.ne.s32.totalorder %s27, %s30
      %p39 = scmp.eq.s32.totalorder %s22, 1
      %p40 = por %p38, %p39
      %p41 = scmp.ne.s32.totalorder %s30, %s31
      %p42 = scmp.eq.s32.totalorder %s22, 0
      %p43 = por %p41, %p42
      %p44 = scmp.ne.s32.totalorder %s30, %s31
      %p45 = scmp.eq.s32.totalorder %s23, 1
      %p46 = por %p44, %p45
      %p48 = scmp.ne.s32.totalorder %s31, %s47
      %p49 = scmp.eq.s32.totalorder %s23, 0
      %p50 = por %p48, %p49
      %s52 = sadd.s32 %s51, 1
      %p55 = scmp.eq.s32.totalorder %s17, 1
      %p56 = scmp.ne.s32.totalorder %s51, %s53
      %p57 = scmp.eq.s32.totalorder %s17, 0
      %p58 = por %p56, %p57
      %p59 = scmp.ne.s32.totalorder %s51, %s53
      %p60 = scmp.eq.s32.totalorder %s22, 1
      %p61 = por %p59, %p60
      %p62 = scmp.ne.s32.totalorder %s53, %s54
      %p63 = scmp.eq.s32.totalorder %s22, 0
      %p64 = por %p62, %p63
      %p65 = scmp.ne.s32.totalorder %s53, %s54
      %p66 = scmp.eq.s32.totalorder %s23, 1
      %p67 = por %p65, %p66
      %p69 = scmp.ne.s32.totalorder %s54, %s68
      %p70 = scmp.eq.s32.totalorder %s23, 0
      %p71 = por %p69, %p70
      %s73 = sadd.s32 %s72, 1
      %p76 = scmp.eq.s32.totalorder %s17, 1
      %p77 = scmp.ne.s32.totalorder %s72, %s74
      %p78 = scmp.eq.s32.totalorder %s17, 0
      %p79 = por %p77, %p78
      %p80 = scmp.ne.s32.totalorder %s72, %s74
      %p81 = scmp.eq.s32.totalorder %s22, 1
      %p82 = por %p80, %p81
      %p83 = scmp.ne.s32.totalorder %s74, %s75
      %p84 = scmp.eq.s32.totalorder %s22, 0
      %p85 = por %p83, %p84
      %p86 = scmp.ne.s32.totalorder %s74, %s75
      %p87 = scmp.eq.s32.totalorder %s23, 1
      %p88 = por %p86, %p87
      %p90 = scmp.ne.s32.totalorder %s75, %s89
      %p91 = scmp.eq.s32.totalorder %s23, 0
      %p92 = por %p90, %p91
      %s93 = ssub.s32 %s17, %s24
      %p94 = scmp.eq.s32.totalorder %s93, 0
      %s96 = sadd.s32 %s95, 1
      %s97 = scalar_select %p94, %s95, %s96
      %p100 = pneg %p94
      %p101 = scmp.eq.s32.totalorder %s17, 1
      %p102 = por %p100, %p101
      %p103 = scmp.ne.s32.totalorder %s95, %s98
      %p104 = scmp.eq.s32.totalorder %s17, 0
      %p105 = por %p103, %p104
      %p106 = scmp.ne.s32.totalorder %s95, %s98
      %p107 = scmp.eq.s32.totalorder %s22, 1
      %p108 = por %p106, %p107
      %p109 = scmp.ne.s32.totalorder %s98, %s99
      %p110 = scmp.eq.s32.totalorder %s22, 0
      %p111 = por %p109, %p110
      %p112 = scmp.ne.s32.totalorder %s98, %s99
      %p113 = scmp.eq.s32.totalorder %s23, 1
      %p114 = por %p112, %p113
      %p116 = scmp.ne.s32.totalorder %s99, %s115
      %p117 = scmp.eq.s32.totalorder %s23, 0
      %p118 = por %p116, %p117
      %s120 = sadd.s32 %s119, 1
      %p123 = scmp.eq.s32.totalorder %s17, 1
      %p124 = scmp.ne.s32.totalorder %s119, %s121
      %p125 = scmp.eq.s32.totalorder %s17, 0
      %p126 = por %p124, %p125
      %p127 = scmp.ne.s32.totalorder %s119, %s121
      %p128 = scmp.eq.s32.totalorder %s22, 1
      %p129 = por %p127, %p128
      %p130 = scmp.ne.s32.totalorder %s121, %s122
      %p131 = scmp.eq.s32.totalorder %s22, 0
      %p132 = por %p130, %p131
      %p133 = scmp.ne.s32.totalorder %s121, %s122
      %p134 = scmp.eq.s32.totalorder %s23, 1
      %p135 = por %p133, %p134
      %p137 = scmp.ne.s32.totalorder %s122, %s136
      %p138 = scmp.eq.s32.totalorder %s23, 0
      %p139 = por %p137, %p138
      %s140 = ssub.s32 %s17, %s24
      %p141 = scmp.eq.s32.totalorder %s140, 0
      %s143 = sadd.s32 %s142, 1
      %s144 = scalar_select %p141, %s142, %s143
      %p147 = pneg %p141
      %p148 = scmp.eq.s32.totalorder %s17, 1
      %p149 = por %p147, %p148
      %p150 = scmp.ne.s32.totalorder %s142, %s145
      %p151 = scmp.eq.s32.totalorder %s17, 0
      %p152 = por %p150, %p151
      %p153 = scmp.ne.s32.totalorder %s142, %s145
      %p154 = scmp.eq.s32.totalorder %s22, 1
      %p155 = por %p153, %p154
      %p156 = scmp.ne.s32.totalorder %s145, %s146
      %p157 = scmp.eq.s32.totalorder %s22, 0
      %p158 = por %p156, %p157
      %p159 = scmp.ne.s32.totalorder %s145, %s146
      %p160 = scmp.eq.s32.totalorder %s23, 1
      %p161 = por %p159, %p160
      %p163 = scmp.ne.s32.totalorder %s146, %s162
      %p164 = scmp.eq.s32.totalorder %s23, 0
      %p165 = por %p163, %p164
      %s166 = ssub.s32 %s17, %s24
      %p167 = scmp.eq.s32.totalorder %s166, 0
      %s169 = sadd.s32 %s168, 1
      %s170 = scalar_select %p167, %s168, %s169
      %p173 = pneg %p167
      %p174 = scmp.eq.s32.totalorder %s17, 1
      %p175 = por %p173, %p174
      %p176 = scmp.ne.s32.totalorder %s168, %s171
      %p177 = scmp.eq.s32.totalorder %s17, 0
      %p178 = por %p176, %p177
      %p179 = scmp.ne.s32.totalorder %s168, %s171
      %p180 = scmp.eq.s32.totalorder %s22, 1
      %p181 = por %p179, %p180
      %p182 = scmp.ne.s32.totalorder %s171, %s172
      %p183 = scmp.eq.s32.totalorder %s22, 0
      %p184 = por %p182, %p183
      %p185 = scmp.ne.s32.totalorder %s171, %s172
      %p186 = scmp.eq.s32.totalorder %s23, 1
      %p187 = por %p185, %p186
      %p189 = scmp.ne.s32.totalorder %s172, %s188
      %p190 = scmp.eq.s32.totalorder %s23, 0
      %p191 = por %p189, %p190
      %s193 = sadd.s32 %s192, 1
      %p196 = scmp.eq.s32.totalorder %s17, 1
      %p197 = scmp.ne.s32.totalorder %s192, %s194
      %p198 = scmp.eq.s32.totalorder %s17, 0
      %p199 = por %p197, %p198
      %p200 = scmp.ne.s32.totalorder %s192, %s194
      %p201 = scmp.eq.s32.totalorder %s22, 1
      %p202 = por %p200, %p201
      %p203 = scmp.ne.s32.totalorder %s194, %s195
      %p204 = scmp.eq.s32.totalorder %s22, 0
      %p205 = por %p203, %p204
      %p206 = scmp.ne.s32.totalorder %s194, %s195
      %p207 = scmp.eq.s32.totalorder %s23, 1
      %p208 = por %p206, %p207
      %p210 = scmp.ne.s32.totalorder %s195, %s209
      %p211 = scmp.eq.s32.totalorder %s23, 0
      %p212 = por %p210, %p211
      %s213 = ssub.s32 %s17, %s24
      %p214 = scmp.eq.s32.totalorder %s213, 0
      %s216 = sadd.s32 %s215, 1
      %s217 = scalar_select %p214, %s215, %s216
      %p220 = pneg %p214
      %p221 = scmp.eq.s32.totalorder %s17, 1
      %p222 = por %p220, %p221
      %p223 = scmp.ne.s32.totalorder %s215, %s218
      %p224 = scmp.eq.s32.totalorder %s17, 0
      %p225 = por %p223, %p224
      %p226 = scmp.ne.s32.totalorder %s215, %s218
      %p227 = scmp.eq.s32.totalorder %s22, 1
      %p228 = por %p226, %p227
      %p229 = scmp.ne.s32.totalorder %s218, %s219
      %p230 = scmp.eq.s32.totalorder %s22, 0
      %p231 = por %p229, %p230
      %p232 = scmp.ne.s32.totalorder %s218, %s219
      %p233 = scmp.eq.s32.totalorder %s23, 1
      %p234 = por %p232, %p233
      %p236 = scmp.ne.s32.totalorder %s219, %s235
      %p237 = scmp.eq.s32.totalorder %s23, 0
      %p238 = por %p236, %p237
      %p239 = scmp.le.s32.totalorder 1, %s17
      %p240 = scmp.lt.s32.totalorder %s17, 3
      %p241 = pnand %p239, %p240
      %p242 = pneg %p241
      // Predicated region
      $region9: #{tpu_custom_call.1} parent=5 // pred_check
        _
      $region10: #{tpu_custom_call.1} parent=5 // pred_check_branch
        %244 = sbr.rel (%p241) target = $region12
      $region11: #{tpu_custom_call.1} parent=5 // pred_region
        %s245 = ssub.s32 %s17, 1
        // Predicated region
        $region13: #{tpu_custom_call.1} parent=11 // pred_check
          %p246 = pneg %p64
        $region14: #{tpu_custom_call.1} parent=11 // pred_check_branch
          %248 = sbr.rel (%p246) target = $region16
        $region15: #{tpu_custom_call.1} parent=11 // pred_region
          _
        $region16: #{tpu_custom_call.1} parent=11 // pred_fallthru
          _
        // Predicated region
        $region17: #{tpu_custom_call.1} parent=11 // pred_check
          %p249 = pneg %p85
        $region18: #{tpu_custom_call.1} parent=11 // pred_check_branch
          %251 = sbr.rel (%p249) target = $region20
        $region19: #{tpu_custom_call.1} parent=11 // pred_region
          _
        $region20: #{tpu_custom_call.1} parent=11 // pred_fallthru
          _
        // Predicated region
        $region21: #{tpu_custom_call.1} parent=11 // pred_check
          %p252 = pneg %p132
        $region22: #{tpu_custom_call.1} parent=11 // pred_check_branch
          %254 = sbr.rel (%p252) target = $region24
        $region23: #{tpu_custom_call.1} parent=11 // pred_region
          _
        $region24: #{tpu_custom_call.1} parent=11 // pred_fallthru
          _
        // Predicated region
        $region25: #{tpu_custom_call.1} parent=11 // pred_check
          %p255 = pneg %p205
        $region26: #{tpu_custom_call.1} parent=11 // pred_check_branch
          %257 = sbr.rel (%p255) target = $region28
        $region27: #{tpu_custom_call.1} parent=11 // pred_region
          _
        $region28: #{tpu_custom_call.1} parent=11 // pred_fallthru
          _
      $region12: #{tpu_custom_call.1} parent=5 // pred_fallthru
        _
      %p258 = scmp.lt.s32.totalorder %s17, 2
      // Predicated region
      $region29: #{tpu_custom_call.1} parent=5 // pred_check
        %p259 = pneg %p258
      $region30: #{tpu_custom_call.1} parent=5 // pred_check_branch
        %261 = sbr.rel (%p259) target = $region32
      $region31: #{tpu_custom_call.1} parent=5 // pred_region
        // Predicated region
        $region33: #{tpu_custom_call.1} parent=31 // pred_check
          %p262 = pneg %p37
        $region34: #{tpu_custom_call.1} parent=31 // pred_check_branch
          %264 = sbr.rel (%p262) target = $region36
        $region35: #{tpu_custom_call.1} parent=31 // pred_region
          %s265 = smul.u32 16, %s17
          %p266 = scmp.lt.s32.totalorder %s265, 31
          %s267 = scalar_select %p266, %s265, 31
          %s268 = smul.addr %s267, 8
          %s269 = scalar_lea.vmem %s0, %s268
          %s270 = smul.u32 16, %s17
        $region36: #{tpu_custom_call.1} parent=31 // pred_fallthru
          _
        // Predicated region
        $region37: #{tpu_custom_call.1} parent=31 // pred_check
          %p271 = pneg %p105
        $region38: #{tpu_custom_call.1} parent=31 // pred_check_branch
          %273 = sbr.rel (%p271) target = $region40
        $region39: #{tpu_custom_call.1} parent=31 // pred_region
          %s274 = smul.u32 16, %s17
          %p275 = scmp.lt.s32.totalorder %s274, 31
          %s276 = scalar_select %p275, %s274, 31
          %s277 = smul.addr %s276, 8
          %s278 = scalar_lea.vmem %s3, %s277
          %s279 = smul.u32 16, %s17
        $region40: #{tpu_custom_call.1} parent=31 // pred_fallthru
          _
        // Predicated region
        $region41: #{tpu_custom_call.1} parent=31 // pred_check
          %p280 = pneg %p152
        $region42: #{tpu_custom_call.1} parent=31 // pred_check_branch
          %282 = sbr.rel (%p280) target = $region44
        $region43: #{tpu_custom_call.1} parent=31 // pred_region
          %s283 = smul.u32 16, %s17
          %p284 = scmp.lt.s32.totalorder %s283, 31
          %s285 = scalar_select %p284, %s283, 31
          %s286 = smul.addr %s285, 8
          %s287 = scalar_lea.vmem %s5, %s286
          %s288 = smul.u32 16, %s17
        $region44: #{tpu_custom_call.1} parent=31 // pred_fallthru
          _
        // Predicated region
        $region45: #{tpu_custom_call.1} parent=31 // pred_check
          %p289 = pneg %p178
        $region46: #{tpu_custom_call.1} parent=31 // pred_check_branch
          %291 = sbr.rel (%p289) target = $region48
        $region47: #{tpu_custom_call.1} parent=31 // pred_region
          %s292 = smul.u32 16, %s17
          %p293 = scmp.lt.s32.totalorder %s292, 31
          %s294 = scalar_select %p293, %s292, 31
          %s295 = smul.addr %s294, 8
          %s296 = scalar_lea.vmem %s6, %s295
          %s297 = smul.u32 16, %s17
        $region48: #{tpu_custom_call.1} parent=31 // pred_fallthru
          _
      $region32: #{tpu_custom_call.1} parent=5 // pred_fallthru
        _
      %p298 = scmp.le.s32.totalorder 1, %s17
      %p299 = scmp.lt.s32.totalorder %s17, 3
      %p300 = pnand %p298, %p299
      %p301 = pneg %p300
      // Predicated region
      $region49: #{tpu_custom_call.1} parent=5 // pred_check
        _
      $region50: #{tpu_custom_call.1} parent=5 // pred_check_branch
        %303 = sbr.rel (%p300) target = $region52
      $region51: #{tpu_custom_call.1} parent=5 // pred_region
        %s304 = ssub.s32 %s17, 1
        %s305 = smul.u32 16, %s22
        %p306 = scmp.lt.s32.totalorder %s305, 31
        %s307 = scalar_select %p306, %s305, 31
        %s308 = smul.addr %s307, 8
        %s309 = scalar_lea.vmem %s0, %s308
        %p310 = pneg %p43
        %p311 = pneg %p40
        %p312 = pneg %p64
        %p313 = pneg %p61
        %p314 = pneg %p85
        %p315 = pneg %p82
        %s316 = smul.u32 16, %s22
        %p317 = scmp.lt.s32.totalorder %s316, 31
        %s318 = scalar_select %p317, %s316, 31
        %s319 = smul.addr %s318, 8
        %s320 = scalar_lea.vmem %s3, %s319
        %p321 = pneg %p111
        %p322 = pneg %p108
        %p323 = pneg %p132
        %p324 = pneg %p129
        %s325 = smul.u32 16, %s22
        %p326 = scmp.lt.s32.totalorder %s325, 31
        %s327 = scalar_select %p326, %s325, 31
        %s328 = smul.addr %s327, 8
        %s329 = scalar_lea.vmem %s5, %s328
        %p330 = pneg %p158
        %p331 = pneg %p155
        %s332 = smul.u32 16, %s22
        %p333 = scmp.lt.s32.totalorder %s332, 31
        %s334 = scalar_select %p333, %s332, 31
        %s335 = smul.addr %s334, 8
        %s336 = scalar_lea.vmem %s6, %s335
        %p337 = pneg %p184
        %p338 = pneg %p181
        %p339 = pneg %p205
        %p340 = pneg %p202
        %p341 = pneg %p231
        %p342 = pneg %p228
        %s343 = sand.u32 %s218, 1
        %s344 = scalar_lea.sflag [#allocation3], %s343
        %s345 = sand.u32 %s218, 1
        %s346 = smul.addr %s345, 128
        %s347 = scalar_lea.vmem [#allocation2], %s346
        %s348 = smul.u32 16, %s22
        %p349 = scmp.lt.s32.totalorder %s348, 31
        %s350 = scalar_select %p349, %s348, 31
        %s351 = smul.addr %s350, 8
        %s352 = scalar_lea.vmem %s0, %s351
        %s353 = smul.u32 16, %s22
        %s354 = smul.u32 16, %s22
        %p355 = scmp.lt.s32.totalorder %s354, 31
        %s356 = scalar_select %p355, %s354, 31
        %s357 = smul.addr %s356, 8
        %s358 = scalar_lea.vmem %s3, %s357
        %s359 = smul.u32 16, %s22
        %s360 = smul.u32 16, %s22
        %p361 = scmp.lt.s32.totalorder %s360, 31
        %s362 = scalar_select %p361, %s360, 31
        %s363 = smul.addr %s362, 8
        %s364 = scalar_lea.vmem %s5, %s363
        %s365 = smul.u32 16, %s22
        %s366 = smul.u32 16, %s22
        %p367 = scmp.lt.s32.totalorder %s366, 31
        %s368 = scalar_select %p367, %s366, 31
        %s369 = smul.addr %s368, 8
        %s370 = scalar_lea.vmem %s6, %s369
        %s371 = smul.u32 16, %s22
        %s372 = smul.u32 16, %s22
        %v374 = vld [vmem:[%s352] sm:$0xff]
        %v375 = vld [vmem:[%s352 + $0x8] sm:$0xff]
        %v376 = vld [vmem:[%s352 + $0x10] sm:$0xff]
        %v377 = vld [vmem:[%s352 + $0x18] sm:$0xff]
        %v378 = vld [vmem:[%s352 + $0x20] sm:$0xff]
        %v379 = vld [vmem:[%s352 + $0x28] sm:$0xff]
        %v380 = vld [vmem:[%s352 + $0x30] sm:$0xff]
        %v381 = vld [vmem:[%s352 + $0x38] sm:$0xff]
        %v382 = vld [vmem:[%s352 + $0x40] sm:$0xff]
        %v383 = vld [vmem:[%s352 + $0x48] sm:$0xff]
        %v384 = vld [vmem:[%s352 + $0x50] sm:$0xff]
        %v385 = vld [vmem:[%s352 + $0x58] sm:$0xff]
        %v386 = vld [vmem:[%s352 + $0x60] sm:$0xff]
        %v387 = vld [vmem:[%s352 + $0x68] sm:$0xff]
        %v388 = vld [vmem:[%s352 + $0x70] sm:$0xff]
        %v389 = vld [vmem:[%s352 + $0x78] sm:$0xff]
        %v390 = vpack.c.bf16 %v375, %v374
        %v391 = vpack.c.bf16 %v377, %v376
        %v392 = vpack.c.bf16 %v379, %v378
        %v393 = vpack.c.bf16 %v381, %v380
        %v394 = vpack.c.bf16 %v383, %v382
        %v395 = vpack.c.bf16 %v385, %v384
        %v396 = vpack.c.bf16 %v387, %v386
        %v397 = vpack.c.bf16 %v389, %v388
        %v398 = vld [vmem:[%s1] sm:$0xff]
        %v399 = vld [vmem:[%s1 + $0x8] sm:$0xff]
        %v400 = vld [vmem:[%s1 + $0x10] sm:$0xff]
        %v401 = vld [vmem:[%s1 + $0x18] sm:$0xff]
        %v402 = vld [vmem:[%s1 + $0x20] sm:$0xff]
        %v403 = vld [vmem:[%s1 + $0x28] sm:$0xff]
        %v404 = vld [vmem:[%s1 + $0x30] sm:$0xff]
        %v405 = vld [vmem:[%s1 + $0x38] sm:$0xff]
        %v406 = vpack.c.bf16 %v399, %v398
        %v407 = vpack.c.bf16 %v401, %v400
        %v408 = vpack.c.bf16 %v403, %v402
        %v409 = vpack.c.bf16 %v405, %v404
        %v410 = vld [vmem:[%s2] sm:$0x1]
        %v412 = vlaneseq
        %v413 = vshrl.u32 %v412, 7
        %v414 = vsub.s32 0, %v413
        %v415 = vrot.slane %v410, %v414
        %vm417 = vcmask 523264
        %v419 = vsel %vm417, %v390, 0
        %v422 = vsel %vm417, %v391, 0
        %v425 = vsel %vm417, %v392, 0
        %v428 = vsel %vm417, %v393, 0
        %v431 = vsel %vm417, %v394, 0
        %v434 = vsel %vm417, %v395, 0
        %v437 = vsel %vm417, %v396, 0
        %v440 = vsel %vm417, %v397, 0
        %442 = vmatprep.subr.bf16.mxu0 0
        %443 = vmatpush1.bf16.msra.mxu0 %v406
        %444 = vmatprep.subr.bf16.mxu0 0
        %445 = vmatpush1.bf16.msra.mxu0 %v407
        %446 = vmatprep.subr.bf16.mxu0 0
        %447 = vmatpush1.bf16.msra.mxu0 %v408
        %448 = vmatprep.subr.bf16.mxu0 0
        %449 = vmatpush1.bf16.msra.mxu0 %v409
        %450 = vmatprep.subr.bf16.mxu0 0
        %451 = vmatpush1.bf16.msra.mxu0 0
        %452 = vmatprep.subr.bf16.mxu0 0
        %453 = vmatpush1.bf16.msra.mxu0 0
        %454 = vmatprep.subr.bf16.mxu0 0
        %455 = vmatpush1.bf16.msra.mxu0 0
        %456 = vmatprep.subr.bf16.mxu0 0
        %457 = vmatpush1.bf16.msra.mxu0 0
        %458 = vmatprep.subr.bf16.mxu0 0
        %459 = vmatpush1.bf16.msra.mxu0 0
        %460 = vmatprep.subr.bf16.mxu0 0
        %461 = vmatpush1.bf16.msra.mxu0 0
        %462 = vmatprep.subr.bf16.mxu0 0
        %463 = vmatpush1.bf16.msra.mxu0 0
        %464 = vmatprep.subr.bf16.mxu0 0
        %465 = vmatpush1.bf16.msra.mxu0 0
        %466 = vmatprep.subr.bf16.mxu0 0
        %467 = vmatpush1.bf16.msra.mxu0 0
        %468 = vmatprep.subr.bf16.mxu0 0
        %469 = vmatpush1.bf16.msra.mxu0 0
        %470 = vmatprep.subr.bf16.mxu0 0
        %471 = vmatpush1.bf16.msra.mxu0 0
        %472 = vmatprep.subr.bf16.mxu0 0
        %473 = vmatpush1.bf16.msra.mxu0 0
        %474 = vmatprep.mubr.bf16.mxu0 0
        %475 = vmatmul.mubr.bf16.gmra.mrb[0].mxu0 %v419
        %v476 = vpop.f32.mrb[0].mxu0
        %v477 = vadd.f32 %v415, %v476
        %v478 = vpop.f32.mrb[0].mxu0
        %v479 = vpop.f32.mrb[0].mxu0
        %v480 = vadd.f32 %v415, %v479
        %v481 = vpop.f32.mrb[0].mxu0
        %482 = vmatprep.mubr.bf16.mxu0 0
        %483 = vmatmul.mubr.bf16.gmra.mrb[0].mxu0 %v422
        %v484 = vpop.f32.mrb[0].mxu0
        %v485 = vadd.f32 %v415, %v484
        %v486 = vpop.f32.mrb[0].mxu0
        %v487 = vpop.f32.mrb[0].mxu0
        %v488 = vadd.f32 %v415, %v487
        %v489 = vpop.f32.mrb[0].mxu0
        %490 = vmatprep.mubr.bf16.mxu0 0
        %491 = vmatmul.mubr.bf16.gmra.mrb[0].mxu0 %v425
        %v492 = vpop.f32.mrb[0].mxu0
        %v493 = vadd.f32 %v415, %v492
        %v494 = vpop.f32.mrb[0].mxu0
        %v495 = vpop.f32.mrb[0].mxu0
        %v496 = vadd.f32 %v415, %v495
        %v497 = vpop.f32.mrb[0].mxu0
        %498 = vmatprep.mubr.bf16.mxu0 0
        %499 = vmatmul.mubr.bf16.gmra.mrb[0].mxu0 %v428
        %v500 = vpop.f32.mrb[0].mxu0
        %v501 = vadd.f32 %v415, %v500
        %v502 = vpop.f32.mrb[0].mxu0
        %v503 = vpop.f32.mrb[0].mxu0
        %v504 = vadd.f32 %v415, %v503
        %v505 = vpop.f32.mrb[0].mxu0
        %506 = vmatprep.mubr.bf16.mxu0 0
        %507 = vmatmul.mubr.bf16.gmra.mrb[0].mxu0 %v431
        %v508 = vpop.f32.mrb[0].mxu0
        %v509 = vadd.f32 %v415, %v508
        %v510 = vpop.f32.mrb[0].mxu0
        %v511 = vpop.f32.mrb[0].mxu0
        %v512 = vadd.f32 %v415, %v511
        %v513 = vpop.f32.mrb[0].mxu0
        %514 = vmatprep.mubr.bf16.mxu0 0
        %515 = vmatmul.mubr.bf16.gmra.mrb[0].mxu0 %v434
        %v516 = vpop.f32.mrb[0].mxu0
        %v517 = vadd.f32 %v415, %v516
        %v518 = vpop.f32.mrb[0].mxu0
        %v519 = vpop.f32.mrb[0].mxu0
        %v520 = vadd.f32 %v415, %v519
        %v521 = vpop.f32.mrb[0].mxu0
        %522 = vmatprep.mubr.bf16.mxu0 0
        %523 = vmatmul.mubr.bf16.gmra.mrb[0].mxu0 %v437
        %v524 = vpop.f32.mrb[0].mxu0
        %v525 = vadd.f32 %v415, %v524
        %v526 = vpop.f32.mrb[0].mxu0
        %v527 = vpop.f32.mrb[0].mxu0
        %v528 = vadd.f32 %v415, %v527
        %v529 = vpop.f32.mrb[0].mxu0
        %530 = vmatprep.mubr.bf16.mxu0 0
        %531 = vmatmul.mubr.bf16.gmra.mrb[0].mxu0 %v440
        %v532 = vpop.f32.mrb[0].mxu0
        %v533 = vadd.f32 %v415, %v532
        %v534 = vpop.f32.mrb[0].mxu0
        %v535 = vpop.f32.mrb[0].mxu0
        %v536 = vadd.f32 %v415, %v535
        %v537 = vpop.f32.mrb[0].mxu0
        %538 = vdwg.mxu0
        %v539 = vlaneseq
        %v540 = vand.u32 %v539, 127
        %v541 = vld [vmem:[%s358] sm:$0xff]
        %v542 = vld [vmem:[%s358 + $0x8] sm:$0xff]
        %v543 = vld [vmem:[%s358 + $0x10] sm:$0xff]
        %v544 = vld [vmem:[%s358 + $0x18] sm:$0xff]
        %v545 = vld [vmem:[%s358 + $0x20] sm:$0xff]
        %v546 = vld [vmem:[%s358 + $0x28] sm:$0xff]
        %v547 = vld [vmem:[%s358 + $0x30] sm:$0xff]
        %v548 = vld [vmem:[%s358 + $0x38] sm:$0xff]
        %v549 = vld [vmem:[%s358 + $0x40] sm:$0xff]
        %v550 = vld [vmem:[%s358 + $0x48] sm:$0xff]
        %v551 = vld [vmem:[%s358 + $0x50] sm:$0xff]
        %v552 = vld [vmem:[%s358 + $0x58] sm:$0xff]
        %v553 = vld [vmem:[%s358 + $0x60] sm:$0xff]
        %v554 = vld [vmem:[%s358 + $0x68] sm:$0xff]
        %v555 = vld [vmem:[%s358 + $0x70] sm:$0xff]
        %v556 = vld [vmem:[%s358 + $0x78] sm:$0xff]
        %557 = vset.pattern.permute.xlu0 0
        %558 = vperm.xlu0 %557, %v541
        %v559 = vpop.permute.xlu0 %558
        %560 = vset.pattern.permute.xlu0 0
        %561 = vperm.xlu0 %560, %v542
        %v562 = vpop.permute.xlu0 %561
        %563 = vset.pattern.permute.xlu0 0
        %564 = vperm.xlu0 %563, %v543
        %v565 = vpop.permute.xlu0 %564
        %566 = vset.pattern.permute.xlu0 0
        %567 = vperm.xlu0 %566, %v544
        %v568 = vpop.permute.xlu0 %567
        %569 = vset.pattern.permute.xlu0 0
        %570 = vperm.xlu0 %569, %v545
        %v571 = vpop.permute.xlu0 %570
        %572 = vset.pattern.permute.xlu0 0
        %573 = vperm.xlu0 %572, %v546
        %v574 = vpop.permute.xlu0 %573
        %575 = vset.pattern.permute.xlu0 0
        %576 = vperm.xlu0 %575, %v547
        %v577 = vpop.permute.xlu0 %576
        %578 = vset.pattern.permute.xlu0 0
        %579 = vperm.xlu0 %578, %v548
        %v580 = vpop.permute.xlu0 %579
        %581 = vset.pattern.permute.xlu0 0
        %582 = vperm.xlu0 %581, %v549
        %v583 = vpop.permute.xlu0 %582
        %584 = vset.pattern.permute.xlu0 0
        %585 = vperm.xlu0 %584, %v550
        %v586 = vpop.permute.xlu0 %585
        %587 = vset.pattern.permute.xlu0 0
        %588 = vperm.xlu0 %587, %v551
        %v589 = vpop.permute.xlu0 %588
        %590 = vset.pattern.permute.xlu0 0
        %591 = vperm.xlu0 %590, %v552
        %v592 = vpop.permute.xlu0 %591
        %593 = vset.pattern.permute.xlu0 0
        %594 = vperm.xlu0 %593, %v553
        %v595 = vpop.permute.xlu0 %594
        %596 = vset.pattern.permute.xlu0 0
        %597 = vperm.xlu0 %596, %v554
        %v598 = vpop.permute.xlu0 %597
        %599 = vset.pattern.permute.xlu0 0
        %600 = vperm.xlu0 %599, %v555
        %v601 = vpop.permute.xlu0 %600
        %602 = vset.pattern.permute.xlu0 0
        %603 = vperm.xlu0 %602, %v556
        %v604 = vpop.permute.xlu0 %603
        %vm605 = vcmp.eq.s32.totalorder %v559, %v540
        %vm606 = vcmp.eq.s32.totalorder %v562, %v540
        %vm607 = vcmp.eq.s32.totalorder %v565, %v540
        %vm608 = vcmp.eq.s32.totalorder %v568, %v540
        %vm609 = vcmp.eq.s32.totalorder %v571, %v540
        %vm610 = vcmp.eq.s32.totalorder %v574, %v540
        %vm611 = vcmp.eq.s32.totalorder %v577, %v540
        %vm612 = vcmp.eq.s32.totalorder %v580, %v540
        %vm613 = vcmp.eq.s32.totalorder %v583, %v540
        %vm614 = vcmp.eq.s32.totalorder %v586, %v540
        %vm615 = vcmp.eq.s32.totalorder %v589, %v540
        %vm616 = vcmp.eq.s32.totalorder %v592, %v540
        %vm617 = vcmp.eq.s32.totalorder %v595, %v540
        %vm618 = vcmp.eq.s32.totalorder %v598, %v540
        %vm619 = vcmp.eq.s32.totalorder %v601, %v540
        %vm620 = vcmp.eq.s32.totalorder %v604, %v540
        %v621 = vsel %vm605, 1.0, 0.0
        %v622 = vsel %vm606, 1.0, 0.0
        %v623 = vsel %vm607, 1.0, 0.0
        %v624 = vsel %vm608, 1.0, 0.0
        %v625 = vsel %vm609, 1.0, 0.0
        %v626 = vsel %vm610, 1.0, 0.0
        %v627 = vsel %vm611, 1.0, 0.0
        %v628 = vsel %vm612, 1.0, 0.0
        %v629 = vsel %vm613, 1.0, 0.0
        %v630 = vsel %vm614, 1.0, 0.0
        %v631 = vsel %vm615, 1.0, 0.0
        %v632 = vsel %vm616, 1.0, 0.0
        %v633 = vsel %vm617, 1.0, 0.0
        %v634 = vsel %vm618, 1.0, 0.0
        %v635 = vsel %vm619, 1.0, 0.0
        %v636 = vsel %vm620, 1.0, 0.0
        %v637 = vpack.c.bf16 %v622, %v621
        %v638 = vpack.c.bf16 %v624, %v623
        %v639 = vpack.c.bf16 %v626, %v625
        %v640 = vpack.c.bf16 %v628, %v627
        %v641 = vpack.c.bf16 %v630, %v629
        %v642 = vpack.c.bf16 %v632, %v631
        %v643 = vpack.c.bf16 %v634, %v633
        %v644 = vpack.c.bf16 %v636, %v635
        %v645 = vld [vmem:[%s4] sm:$0xff]
        %v646 = vld [vmem:[%s4 + $0x8] sm:$0xff]
        %v647 = vld [vmem:[%s4 + $0x10] sm:$0xff]
        %v648 = vld [vmem:[%s4 + $0x18] sm:$0xff]
        %v649 = vld [vmem:[%s4 + $0x20] sm:$0xff]
        %v650 = vld [vmem:[%s4 + $0x28] sm:$0xff]
        %v651 = vld [vmem:[%s4 + $0x30] sm:$0xff]
        %v652 = vld [vmem:[%s4 + $0x38] sm:$0xff]
        %v653 = vld [vmem:[%s4 + $0x40] sm:$0xff]
        %v654 = vld [vmem:[%s4 + $0x48] sm:$0xff]
        %v655 = vld [vmem:[%s4 + $0x50] sm:$0xff]
        %v656 = vld [vmem:[%s4 + $0x58] sm:$0xff]
        %v657 = vld [vmem:[%s4 + $0x60] sm:$0xff]
        %v658 = vld [vmem:[%s4 + $0x68] sm:$0xff]
        %v659 = vld [vmem:[%s4 + $0x70] sm:$0xff]
        %v660 = vld [vmem:[%s4 + $0x78] sm:$0xff]
        %v661 = vpack.c.bf16 %v646, %v645
        %v662 = vpack.c.bf16 %v648, %v647
        %v663 = vpack.c.bf16 %v650, %v649
        %v664 = vpack.c.bf16 %v652, %v651
        %v665 = vpack.c.bf16 %v654, %v653
        %v666 = vpack.c.bf16 %v656, %v655
        %v667 = vpack.c.bf16 %v658, %v657
        %v668 = vpack.c.bf16 %v660, %v659
        %669 = vmatprep.subr.bf16.mxu0 0
        %670 = vmatpush1.bf16.msra.mxu0 %v661
        %671 = vmatprep.subr.bf16.mxu0 0
        %672 = vmatpush1.bf16.msra.mxu0 %v662
        %673 = vmatprep.subr.bf16.mxu0 0
        %674 = vmatpush1.bf16.msra.mxu0 %v663
        %675 = vmatprep.subr.bf16.mxu0 0
        %676 = vmatpush1.bf16.msra.mxu0 %v664
        %677 = vmatprep.subr.bf16.mxu0 0
        %678 = vmatpush1.bf16.msra.mxu0 %v665
        %679 = vmatprep.subr.bf16.mxu0 0
        %680 = vmatpush1.bf16.msra.mxu0 %v666
        %681 = vmatprep.subr.bf16.mxu0 0
        %682 = vmatpush1.bf16.msra.mxu0 %v667
        %683 = vmatprep.subr.bf16.mxu0 0
        %684 = vmatpush1.bf16.msra.mxu0 %v668
        %685 = vmatprep.subr.bf16.mxu0 0
        %686 = vmatpush1.bf16.msra.mxu0 0
        %687 = vmatprep.subr.bf16.mxu0 0
        %688 = vmatpush1.bf16.msra.mxu0 0
        %689 = vmatprep.subr.bf16.mxu0 0
        %690 = vmatpush1.bf16.msra.mxu0 0
        %691 = vmatprep.subr.bf16.mxu0 0
        %692 = vmatpush1.bf16.msra.mxu0 0
        %693 = vmatprep.subr.bf16.mxu0 0
        %694 = vmatpush1.bf16.msra.mxu0 0
        %695 = vmatprep.subr.bf16.mxu0 0
        %696 = vmatpush1.bf16.msra.mxu0 0
        %697 = vmatprep.subr.bf16.mxu0 0
        %698 = vmatpush1.bf16.msra.mxu0 0
        %699 = vmatprep.subr.bf16.mxu0 0
        %700 = vmatpush1.bf16.msra.mxu0 0
        %701 = vmatprep.mubr.bf16.mxu0 0
        %702 = vmatmul.mubr.bf16.gmra.mrb[0].mxu0 %v637
        %v703 = vpop.f32.mrb[0].mxu0
        %v704 = vadd.f32 0.0, %v703
        %v705 = vpop.f32.mrb[0].mxu0
        %v706 = vpop.f32.mrb[0].mxu0
        %v707 = vadd.f32 0.0, %v706
        %v708 = vpop.f32.mrb[0].mxu0
        %709 = vmatprep.mubr.bf16.mxu0 0
        %710 = vmatmul.mubr.bf16.gmra.mrb[0].mxu0 %v638
        %v711 = vpop.f32.mrb[0].mxu0
        %v712 = vadd.f32 0.0, %v711
        %v713 = vpop.f32.mrb[0].mxu0
        %v714 = vpop.f32.mrb[0].mxu0
        %v715 = vadd.f32 0.0, %v714
        %v716 = vpop.f32.mrb[0].mxu0
        %717 = vmatprep.mubr.bf16.mxu0 0
        %718 = vmatmul.mubr.bf16.gmra.mrb[0].mxu0 %v639
        %v719 = vpop.f32.mrb[0].mxu0
        %v720 = vadd.f32 0.0, %v719
        %v721 = vpop.f32.mrb[0].mxu0
        %v722 = vpop.f32.mrb[0].mxu0
        %v723 = vadd.f32 0.0, %v722
        %v724 = vpop.f32.mrb[0].mxu0
        %725 = vmatprep.mubr.bf16.mxu0 0
        %726 = vmatmul.mubr.bf16.gmra.mrb[0].mxu0 %v640
        %v727 = vpop.f32.mrb[0].mxu0
        %v728 = vadd.f32 0.0, %v727
        %v729 = vpop.f32.mrb[0].mxu0
        %v730 = vpop.f32.mrb[0].mxu0
        %v731 = vadd.f32 0.0, %v730
        %v732 = vpop.f32.mrb[0].mxu0
        %733 = vmatprep.mubr.bf16.mxu0 0
        %734 = vmatmul.mubr.bf16.gmra.mrb[0].mxu0 %v641
        %v735 = vpop.f32.mrb[0].mxu0
        %v736 = vadd.f32 0.0, %v735
        %v737 = vpop.f32.mrb[0].mxu0
        %v738 = vpop.f32.mrb[0].mxu0
        %v739 = vadd.f32 0.0, %v738
        %v740 = vpop.f32.mrb[0].mxu0
        %741 = vmatprep.mubr.bf16.mxu0 0
        %742 = vmatmul.mubr.bf16.gmra.mrb[0].mxu0 %v642
        %v743 = vpop.f32.mrb[0].mxu0
        %v744 = vadd.f32 0.0, %v743
        %v745 = vpop.f32.mrb[0].mxu0
        %v746 = vpop.f32.mrb[0].mxu0
        %v747 = vadd.f32 0.0, %v746
        %v748 = vpop.f32.mrb[0].mxu0
        %749 = vmatprep.mubr.bf16.mxu0 0
        %750 = vmatmul.mubr.bf16.gmra.mrb[0].mxu0 %v643
        %v751 = vpop.f32.mrb[0].mxu0
        %v752 = vadd.f32 0.0, %v751
        %v753 = vpop.f32.mrb[0].mxu0
        %v754 = vpop.f32.mrb[0].mxu0
        %v755 = vadd.f32 0.0, %v754
        %v756 = vpop.f32.mrb[0].mxu0
        %757 = vmatprep.mubr.bf16.mxu0 0
        %758 = vmatmul.mubr.bf16.gmra.mrb[0].mxu0 %v644
        %v759 = vpop.f32.mrb[0].mxu0
        %v760 = vadd.f32 0.0, %v759
        %v761 = vpop.f32.mrb[0].mxu0
        %v762 = vpop.f32.mrb[0].mxu0
        %v763 = vadd.f32 0.0, %v762
        %v764 = vpop.f32.mrb[0].mxu0
        %765 = vdwg.mxu0
        %v766 = vld [vmem:[%s364] sm:$0xff]
        %v767 = vld [vmem:[%s364 + $0x8] sm:$0xff]
        %v768 = vld [vmem:[%s364 + $0x10] sm:$0xff]
        %v769 = vld [vmem:[%s364 + $0x18] sm:$0xff]
        %v770 = vld [vmem:[%s364 + $0x20] sm:$0xff]
        %v771 = vld [vmem:[%s364 + $0x28] sm:$0xff]
        %v772 = vld [vmem:[%s364 + $0x30] sm:$0xff]
        %v773 = vld [vmem:[%s364 + $0x38] sm:$0xff]
        %v774 = vld [vmem:[%s364 + $0x40] sm:$0xff]
        %v775 = vld [vmem:[%s364 + $0x48] sm:$0xff]
        %v776 = vld [vmem:[%s364 + $0x50] sm:$0xff]
        %v777 = vld [vmem:[%s364 + $0x58] sm:$0xff]
        %v778 = vld [vmem:[%s364 + $0x60] sm:$0xff]
        %v779 = vld [vmem:[%s364 + $0x68] sm:$0xff]
        %v780 = vld [vmem:[%s364 + $0x70] sm:$0xff]
        %v781 = vld [vmem:[%s364 + $0x78] sm:$0xff]
        %v782 = vadd.s32 %v540, 128
        %783 = vset.pattern.permute.xlu0 0
        %784 = vperm.xlu0 %783, %v766
        %v785 = vpop.permute.xlu0 %784
        %786 = vset.pattern.permute.xlu0 0
        %787 = vperm.xlu0 %786, %v767
        %v788 = vpop.permute.xlu0 %787
        %789 = vset.pattern.permute.xlu0 0
        %790 = vperm.xlu0 %789, %v768
        %v791 = vpop.permute.xlu0 %790
        %792 = vset.pattern.permute.xlu0 0
        %793 = vperm.xlu0 %792, %v769
        %v794 = vpop.permute.xlu0 %793
        %795 = vset.pattern.permute.xlu0 0
        %796 = vperm.xlu0 %795, %v770
        %v797 = vpop.permute.xlu0 %796
        %798 = vset.pattern.permute.xlu0 0
        %799 = vperm.xlu0 %798, %v771
        %v800 = vpop.permute.xlu0 %799
        %801 = vset.pattern.permute.xlu0 0
        %802 = vperm.xlu0 %801, %v772
        %v803 = vpop.permute.xlu0 %802
        %804 = vset.pattern.permute.xlu0 0
        %805 = vperm.xlu0 %804, %v773
        %v806 = vpop.permute.xlu0 %805
        %807 = vset.pattern.permute.xlu0 0
        %808 = vperm.xlu0 %807, %v774
        %v809 = vpop.permute.xlu0 %808
        %810 = vset.pattern.permute.xlu0 0
        %811 = vperm.xlu0 %810, %v775
        %v812 = vpop.permute.xlu0 %811
        %813 = vset.pattern.permute.xlu0 0
        %814 = vperm.xlu0 %813, %v776
        %v815 = vpop.permute.xlu0 %814
        %816 = vset.pattern.permute.xlu0 0
        %817 = vperm.xlu0 %816, %v777
        %v818 = vpop.permute.xlu0 %817
        %819 = vset.pattern.permute.xlu0 0
        %820 = vperm.xlu0 %819, %v778
        %v821 = vpop.permute.xlu0 %820
        %822 = vset.pattern.permute.xlu0 0
        %823 = vperm.xlu0 %822, %v779
        %v824 = vpop.permute.xlu0 %823
        %825 = vset.pattern.permute.xlu0 0
        %826 = vperm.xlu0 %825, %v780
        %v827 = vpop.permute.xlu0 %826
        %828 = vset.pattern.permute.xlu0 0
        %829 = vperm.xlu0 %828, %v781
        %v830 = vpop.permute.xlu0 %829
        %vm831 = vcmp.eq.s32.totalorder %v785, %v540
        %vm832 = vcmp.eq.s32.totalorder %v785, %v782
        %vm833 = vcmp.eq.s32.totalorder %v788, %v540
        %vm834 = vcmp.eq.s32.totalorder %v788, %v782
        %vm835 = vcmp.eq.s32.totalorder %v791, %v540
        %vm836 = vcmp.eq.s32.totalorder %v791, %v782
        %vm837 = vcmp.eq.s32.totalorder %v794, %v540
        %vm838 = vcmp.eq.s32.totalorder %v794, %v782
        %vm839 = vcmp.eq.s32.totalorder %v797, %v540
        %vm840 = vcmp.eq.s32.totalorder %v797, %v782
        %vm841 = vcmp.eq.s32.totalorder %v800, %v540
        %vm842 = vcmp.eq.s32.totalorder %v800, %v782
        %vm843 = vcmp.eq.s32.totalorder %v803, %v540
        %vm844 = vcmp.eq.s32.totalorder %v803, %v782
        %vm845 = vcmp.eq.s32.totalorder %v806, %v540
        %vm846 = vcmp.eq.s32.totalorder %v806, %v782
        %vm847 = vcmp.eq.s32.totalorder %v809, %v540
        %vm848 = vcmp.eq.s32.totalorder %v809, %v782
        %vm849 = vcmp.eq.s32.totalorder %v812, %v540
        %vm850 = vcmp.eq.s32.totalorder %v812, %v782
        %vm851 = vcmp.eq.s32.totalorder %v815, %v540
        %vm852 = vcmp.eq.s32.totalorder %v815, %v782
        %vm853 = vcmp.eq.s32.totalorder %v818, %v540
        %vm854 = vcmp.eq.s32.totalorder %v818, %v782
        %vm855 = vcmp.eq.s32.totalorder %v821, %v540
        %vm856 = vcmp.eq.s32.totalorder %v821, %v782
        %vm857 = vcmp.eq.s32.totalorder %v824, %v540
        %vm858 = vcmp.eq.s32.totalorder %v824, %v782
        %vm859 = vcmp.eq.s32.totalorder %v827, %v540
        %vm860 = vcmp.eq.s32.totalorder %v827, %v782
        %vm861 = vcmp.eq.s32.totalorder %v830, %v540
        %vm862 = vcmp.eq.s32.totalorder %v830, %v782
        %v863 = vsel %vm831, 1.0, 0.0
        %v864 = vsel %vm832, 1.0, 0.0
        %v865 = vsel %vm833, 1.0, 0.0
        %v866 = vsel %vm834, 1.0, 0.0
        %v867 = vsel %vm835, 1.0, 0.0
        %v868 = vsel %vm836, 1.0, 0.0
        %v869 = vsel %vm837, 1.0, 0.0
        %v870 = vsel %vm838, 1.0, 0.0
        %v871 = vsel %vm839, 1.0, 0.0
        %v872 = vsel %vm840, 1.0, 0.0
        %v873 = vsel %vm841, 1.0, 0.0
        %v874 = vsel %vm842, 1.0, 0.0
        %v875 = vsel %vm843, 1.0, 0.0
        %v876 = vsel %vm844, 1.0, 0.0
        %v877 = vsel %vm845, 1.0, 0.0
        %v878 = vsel %vm846, 1.0, 0.0
        %v879 = vsel %vm847, 1.0, 0.0
        %v880 = vsel %vm848, 1.0, 0.0
        %v881 = vsel %vm849, 1.0, 0.0
        %v882 = vsel %vm850, 1.0, 0.0
        %v883 = vsel %vm851, 1.0, 0.0
        %v884 = vsel %vm852, 1.0, 0.0
        %v885 = vsel %vm853, 1.0, 0.0
        %v886 = vsel %vm854, 1.0, 0.0
        %v887 = vsel %vm855, 1.0, 0.0
        %v888 = vsel %vm856, 1.0, 0.0
        %v889 = vsel %vm857, 1.0, 0.0
        %v890 = vsel %vm858, 1.0, 0.0
        %v891 = vsel %vm859, 1.0, 0.0
        %v892 = vsel %vm860, 1.0, 0.0
        %v893 = vsel %vm861, 1.0, 0.0
        %v894 = vsel %vm862, 1.0, 0.0
        %v895 = vadd.f32 %v863, 0.0
        %v896 = vadd.f32 %v864, 0.0
        %v897 = vadd.f32 %v865, 0.0
        %v898 = vadd.f32 %v866, 0.0
        %v899 = vadd.f32 %v867, 0.0
        %v900 = vadd.f32 %v868, 0.0
        %v901 = vadd.f32 %v869, 0.0
        %v902 = vadd.f32 %v870, 0.0
        %v903 = vadd.f32 %v871, 0.0
        %v904 = vadd.f32 %v872, 0.0
        %v905 = vadd.f32 %v873, 0.0
        %v906 = vadd.f32 %v874, 0.0
        %v907 = vadd.f32 %v875, 0.0
        %v908 = vadd.f32 %v876, 0.0
        %v909 = vadd.f32 %v877, 0.0
        %v910 = vadd.f32 %v878, 0.0
        %v911 = vadd.f32 %v879, 0.0
        %v912 = vadd.f32 %v880, 0.0
        %v913 = vadd.f32 %v881, 0.0
        %v914 = vadd.f32 %v882, 0.0
        %v915 = vadd.f32 %v883, 0.0
        %v916 = vadd.f32 %v884, 0.0
        %v917 = vadd.f32 %v885, 0.0
        %v918 = vadd.f32 %v886, 0.0
        %v919 = vadd.f32 %v887, 0.0
        %v920 = vadd.f32 %v888, 0.0
        %v921 = vadd.f32 %v889, 0.0
        %v922 = vadd.f32 %v890, 0.0
        %v923 = vadd.f32 %v891, 0.0
        %v924 = vadd.f32 %v892, 0.0
        %v925 = vadd.f32 %v893, 0.0
        %v926 = vadd.f32 %v894, 0.0
        %927 = vset.pattern.permute.xlu0 1
        %928 = vperm.xlu0 %927, %v766
        %v929 = vpop.permute.xlu0 %928
        %930 = vset.pattern.permute.xlu0 1
        %931 = vperm.xlu0 %930, %v767
        %v932 = vpop.permute.xlu0 %931
        %933 = vset.pattern.permute.xlu0 1
        %934 = vperm.xlu0 %933, %v768
        %v935 = vpop.permute.xlu0 %934
        %936 = vset.pattern.permute.xlu0 1
        %937 = vperm.xlu0 %936, %v769
        %v938 = vpop.permute.xlu0 %937
        %939 = vset.pattern.permute.xlu0 1
        %940 = vperm.xlu0 %939, %v770
        %v941 = vpop.permute.xlu0 %940
        %942 = vset.pattern.permute.xlu0 1
        %943 = vperm.xlu0 %942, %v771
        %v944 = vpop.permute.xlu0 %943
        %945 = vset.pattern.permute.xlu0 1
        %946 = vperm.xlu0 %945, %v772
        %v947 = vpop.permute.xlu0 %946
        %948 = vset.pattern.permute.xlu0 1
        %949 = vperm.xlu0 %948, %v773
        %v950 = vpop.permute.xlu0 %949
        %951 = vset.pattern.permute.xlu0 1
        %952 = vperm.xlu0 %951, %v774
        %v953 = vpop.permute.xlu0 %952
        %954 = vset.pattern.permute.xlu0 1
        %955 = vperm.xlu0 %954, %v775
        %v956 = vpop.permute.xlu0 %955
        %957 = vset.pattern.permute.xlu0 1
        %958 = vperm.xlu0 %957, %v776
        %v959 = vpop.permute.xlu0 %958
        %960 = vset.pattern.permute.xlu0 1
        %961 = vperm.xlu0 %960, %v777
        %v962 = vpop.permute.xlu0 %961
        %963 = vset.pattern.permute.xlu0 1
        %964 = vperm.xlu0 %963, %v778
        %v965 = vpop.permute.xlu0 %964
        %966 = vset.pattern.permute.xlu0 1
        %967 = vperm.xlu0 %966, %v779
        %v968 = vpop.permute.xlu0 %967
        %969 = vset.pattern.permute.xlu0 1
        %970 = vperm.xlu0 %969, %v780
        %v971 = vpop.permute.xlu0 %970
        %972 = vset.pattern.permute.xlu0 1
        %973 = vperm.xlu0 %972, %v781
        %v974 = vpop.permute.xlu0 %973
        %vm975 = vcmp.eq.s32.totalorder %v929, %v540
        %vm976 = vcmp.eq.s32.totalorder %v929, %v782
        %vm977 = vcmp.eq.s32.totalorder %v932, %v540
        %vm978 = vcmp.eq.s32.totalorder %v932, %v782
        %vm979 = vcmp.eq.s32.totalorder %v935, %v540
        %vm980 = vcmp.eq.s32.totalorder %v935, %v782
        %vm981 = vcmp.eq.s32.totalorder %v938, %v540
        %vm982 = vcmp.eq.s32.totalorder %v938, %v782
        %vm983 = vcmp.eq.s32.totalorder %v941, %v540
        %vm984 = vcmp.eq.s32.totalorder %v941, %v782
        %vm985 = vcmp.eq.s32.totalorder %v944, %v540
        %vm986 = vcmp.eq.s32.totalorder %v944, %v782
        %vm987 = vcmp.eq.s32.totalorder %v947, %v540
        %vm988 = vcmp.eq.s32.totalorder %v947, %v782
        %vm989 = vcmp.eq.s32.totalorder %v950, %v540
        %vm990 = vcmp.eq.s32.totalorder %v950, %v782
        %vm991 = vcmp.eq.s32.totalorder %v953, %v540
        %vm992 = vcmp.eq.s32.totalorder %v953, %v782
        %vm993 = vcmp.eq.s32.totalorder %v956, %v540
        %vm994 = vcmp.eq.s32.totalorder %v956, %v782
        %vm995 = vcmp.eq.s32.totalorder %v959, %v540
        %vm996 = vcmp.eq.s32.totalorder %v959, %v782
        %vm997 = vcmp.eq.s32.totalorder %v962, %v540
        %vm998 = vcmp.eq.s32.totalorder %v962, %v782
        %vm999 = vcmp.eq.s32.totalorder %v965, %v540
        %vm1000 = vcmp.eq.s32.totalorder %v965, %v782
        %vm1001 = vcmp.eq.s32.totalorder %v968, %v540
        %vm1002 = vcmp.eq.s32.totalorder %v968, %v782
        %vm1003 = vcmp.eq.s32.totalorder %v971, %v540
        %vm1004 = vcmp.eq.s32.totalorder %v971, %v782
        %vm1005 = vcmp.eq.s32.totalorder %v974, %v540
        %vm1006 = vcmp.eq.s32.totalorder %v974, %v782
        %v1007 = vsel %vm975, 1.0, 0.0
        %v1008 = vsel %vm976, 1.0, 0.0
        %v1009 = vsel %vm977, 1.0, 0.0
        %v1010 = vsel %vm978, 1.0, 0.0
        %v1011 = vsel %vm979, 1.0, 0.0
        %v1012 = vsel %vm980, 1.0, 0.0
        %v1013 = vsel %vm981, 1.0, 0.0
        %v1014 = vsel %vm982, 1.0, 0.0
        %v1015 = vsel %vm983, 1.0, 0.0
        %v1016 = vsel %vm984, 1.0, 0.0
        %v1017 = vsel %vm985, 1.0, 0.0
        %v1018 = vsel %vm986, 1.0, 0.0
        %v1019 = vsel %vm987, 1.0, 0.0
        %v1020 = vsel %vm988, 1.0, 0.0
        %v1021 = vsel %vm989, 1.0, 0.0
        %v1022 = vsel %vm990, 1.0, 0.0
        %v1023 = vsel %vm991, 1.0, 0.0
        %v1024 = vsel %vm992, 1.0, 0.0
        %v1025 = vsel %vm993, 1.0, 0.0
        %v1026 = vsel %vm994, 1.0, 0.0
        %v1027 = vsel %vm995, 1.0, 0.0
        %v1028 = vsel %vm996, 1.0, 0.0
        %v1029 = vsel %vm997, 1.0, 0.0
        %v1030 = vsel %vm998, 1.0, 0.0
        %v1031 = vsel %vm999, 1.0, 0.0
        %v1032 = vsel %vm1000, 1.0, 0.0
        %v1033 = vsel %vm1001, 1.0, 0.0
        %v1034 = vsel %vm1002, 1.0, 0.0
        %v1035 = vsel %vm1003, 1.0, 0.0
        %v1036 = vsel %vm1004, 1.0, 0.0
        %v1037 = vsel %vm1005, 1.0, 0.0
        %v1038 = vsel %vm1006, 1.0, 0.0
        %v1039 = vadd.f32 %v895, %v1007
        %v1040 = vadd.f32 %v896, %v1008
        %v1041 = vadd.f32 %v897, %v1009
        %v1042 = vadd.f32 %v898, %v1010
        %v1043 = vadd.f32 %v899, %v1011
        %v1044 = vadd.f32 %v900, %v1012
        %v1045 = vadd.f32 %v901, %v1013
        %v1046 = vadd.f32 %v902, %v1014
        %v1047 = vadd.f32 %v903, %v1015
        %v1048 = vadd.f32 %v904, %v1016
        %v1049 = vadd.f32 %v905, %v1017
        %v1050 = vadd.f32 %v906, %v1018
        %v1051 = vadd.f32 %v907, %v1019
        %v1052 = vadd.f32 %v908, %v1020
        %v1053 = vadd.f32 %v909, %v1021
        %v1054 = vadd.f32 %v910, %v1022
        %v1055 = vadd.f32 %v911, %v1023
        %v1056 = vadd.f32 %v912, %v1024
        %v1057 = vadd.f32 %v913, %v1025
        %v1058 = vadd.f32 %v914, %v1026
        %v1059 = vadd.f32 %v915, %v1027
        %v1060 = vadd.f32 %v916, %v1028
        %v1061 = vadd.f32 %v917, %v1029
        %v1062 = vadd.f32 %v918, %v1030
        %v1063 = vadd.f32 %v919, %v1031
        %v1064 = vadd.f32 %v920, %v1032
        %v1065 = vadd.f32 %v921, %v1033
        %v1066 = vadd.f32 %v922, %v1034
        %v1067 = vadd.f32 %v923, %v1035
        %v1068 = vadd.f32 %v924, %v1036
        %v1069 = vadd.f32 %v925, %v1037
        %v1070 = vadd.f32 %v926, %v1038
        %1071 = vset.pattern.permute.xlu0 2
        %1072 = vperm.xlu0 %1071, %v766
        %v1073 = vpop.permute.xlu0 %1072
        %1074 = vset.pattern.permute.xlu0 2
        %1075 = vperm.xlu0 %1074, %v767
        %v1076 = vpop.permute.xlu0 %1075
        %1077 = vset.pattern.permute.xlu0 2
        %1078 = vperm.xlu0 %1077, %v768
        %v1079 = vpop.permute.xlu0 %1078
        %1080 = vset.pattern.permute.xlu0 2
        %1081 = vperm.xlu0 %1080, %v769
        %v1082 = vpop.permute.xlu0 %1081
        %1083 = vset.pattern.permute.xlu0 2
        %1084 = vperm.xlu0 %1083, %v770
        %v1085 = vpop.permute.xlu0 %1084
        %1086 = vset.pattern.permute.xlu0 2
        %1087 = vperm.xlu0 %1086, %v771
        %v1088 = vpop.permute.xlu0 %1087
        %1089 = vset.pattern.permute.xlu0 2
        %1090 = vperm.xlu0 %1089, %v772
        %v1091 = vpop.permute.xlu0 %1090
        %1092 = vset.pattern.permute.xlu0 2
        %1093 = vperm.xlu0 %1092, %v773
        %v1094 = vpop.permute.xlu0 %1093
        %1095 = vset.pattern.permute.xlu0 2
        %1096 = vperm.xlu0 %1095, %v774
        %v1097 = vpop.permute.xlu0 %1096
        %1098 = vset.pattern.permute.xlu0 2
        %1099 = vperm.xlu0 %1098, %v775
        %v1100 = vpop.permute.xlu0 %1099
        %1101 = vset.pattern.permute.xlu0 2
        %1102 = vperm.xlu0 %1101, %v776
        %v1103 = vpop.permute.xlu0 %1102
        %1104 = vset.pattern.permute.xlu0 2
        %1105 = vperm.xlu0 %1104, %v777
        %v1106 = vpop.permute.xlu0 %1105
        %1107 = vset.pattern.permute.xlu0 2
        %1108 = vperm.xlu0 %1107, %v778
        %v1109 = vpop.permute.xlu0 %1108
        %1110 = vset.pattern.permute.xlu0 2
        %1111 = vperm.xlu0 %1110, %v779
        %v1112 = vpop.permute.xlu0 %1111
        %1113 = vset.pattern.permute.xlu0 2
        %1114 = vperm.xlu0 %1113, %v780
        %v1115 = vpop.permute.xlu0 %1114
        %1116 = vset.pattern.permute.xlu0 2
        %1117 = vperm.xlu0 %1116, %v781
        %v1118 = vpop.permute.xlu0 %1117
        %vm1119 = vcmp.eq.s32.totalorder %v1073, %v540
        %vm1120 = vcmp.eq.s32.totalorder %v1073, %v782
        %vm1121 = vcmp.eq.s32.totalorder %v1076, %v540
        %vm1122 = vcmp.eq.s32.totalorder %v1076, %v782
        %vm1123 = vcmp.eq.s32.totalorder %v1079, %v540
        %vm1124 = vcmp.eq.s32.totalorder %v1079, %v782
        %vm1125 = vcmp.eq.s32.totalorder %v1082, %v540
        %vm1126 = vcmp.eq.s32.totalorder %v1082, %v782
        %vm1127 = vcmp.eq.s32.totalorder %v1085, %v540
        %vm1128 = vcmp.eq.s32.totalorder %v1085, %v782
        %vm1129 = vcmp.eq.s32.totalorder %v1088, %v540
        %vm1130 = vcmp.eq.s32.totalorder %v1088, %v782
        %vm1131 = vcmp.eq.s32.totalorder %v1091, %v540
        %vm1132 = vcmp.eq.s32.totalorder %v1091, %v782
        %vm1133 = vcmp.eq.s32.totalorder %v1094, %v540
        %vm1134 = vcmp.eq.s32.totalorder %v1094, %v782
        %vm1135 = vcmp.eq.s32.totalorder %v1097, %v540
        %vm1136 = vcmp.eq.s32.totalorder %v1097, %v782
        %vm1137 = vcmp.eq.s32.totalorder %v1100, %v540
        %vm1138 = vcmp.eq.s32.totalorder %v1100, %v782
        %vm1139 = vcmp.eq.s32.totalorder %v1103, %v540
        %vm1140 = vcmp.eq.s32.totalorder %v1103, %v782
        %vm1141 = vcmp.eq.s32.totalorder %v1106, %v540
        %vm1142 = vcmp.eq.s32.totalorder %v1106, %v782
        %vm1143 = vcmp.eq.s32.totalorder %v1109, %v540
        %vm1144 = vcmp.eq.s32.totalorder %v1109, %v782
        %vm1145 = vcmp.eq.s32.totalorder %v1112, %v540
        %vm1146 = vcmp.eq.s32.totalorder %v1112, %v782
        %vm1147 = vcmp.eq.s32.totalorder %v1115, %v540
        %vm1148 = vcmp.eq.s32.totalorder %v1115, %v782
        %vm1149 = vcmp.eq.s32.totalorder %v1118, %v540
        %vm1150 = vcmp.eq.s32.totalorder %v1118, %v782
        %v1151 = vsel %vm1119, 1.0, 0.0
        %v1152 = vsel %vm1120, 1.0, 0.0
        %v1153 = vsel %vm1121, 1.0, 0.0
        %v1154 = vsel %vm1122, 1.0, 0.0
        %v1155 = vsel %vm1123, 1.0, 0.0
        %v1156 = vsel %vm1124, 1.0, 0.0
        %v1157 = vsel %vm1125, 1.0, 0.0
        %v1158 = vsel %vm1126, 1.0, 0.0
        %v1159 = vsel %vm1127, 1.0, 0.0
        %v1160 = vsel %vm1128, 1.0, 0.0
        %v1161 = vsel %vm1129, 1.0, 0.0
        %v1162 = vsel %vm1130, 1.0, 0.0
        %v1163 = vsel %vm1131, 1.0, 0.0
        %v1164 = vsel %vm1132, 1.0, 0.0
        %v1165 = vsel %vm1133, 1.0, 0.0
        %v1166 = vsel %vm1134, 1.0, 0.0
        %v1167 = vsel %vm1135, 1.0, 0.0
        %v1168 = vsel %vm1136, 1.0, 0.0
        %v1169 = vsel %vm1137, 1.0, 0.0
        %v1170 = vsel %vm1138, 1.0, 0.0
        %v1171 = vsel %vm1139, 1.0, 0.0
        %v1172 = vsel %vm1140, 1.0, 0.0
        %v1173 = vsel %vm1141, 1.0, 0.0
        %v1174 = vsel %vm1142, 1.0, 0.0
        %v1175 = vsel %vm1143, 1.0, 0.0
        %v1176 = vsel %vm1144, 1.0, 0.0
        %v1177 = vsel %vm1145, 1.0, 0.0
        %v1178 = vsel %vm1146, 1.0, 0.0
        %v1179 = vsel %vm1147, 1.0, 0.0
        %v1180 = vsel %vm1148, 1.0, 0.0
        %v1181 = vsel %vm1149, 1.0, 0.0
        %v1182 = vsel %vm1150, 1.0, 0.0
        %v1183 = vadd.f32 %v1039, %v1151
        %v1184 = vadd.f32 %v1040, %v1152
        %v1185 = vadd.f32 %v1041, %v1153
        %v1186 = vadd.f32 %v1042, %v1154
        %v1187 = vadd.f32 %v1043, %v1155
        %v1188 = vadd.f32 %v1044, %v1156
        %v1189 = vadd.f32 %v1045, %v1157
        %v1190 = vadd.f32 %v1046, %v1158
        %v1191 = vadd.f32 %v1047, %v1159
        %v1192 = vadd.f32 %v1048, %v1160
        %v1193 = vadd.f32 %v1049, %v1161
        %v1194 = vadd.f32 %v1050, %v1162
        %v1195 = vadd.f32 %v1051, %v1163
        %v1196 = vadd.f32 %v1052, %v1164
        %v1197 = vadd.f32 %v1053, %v1165
        %v1198 = vadd.f32 %v1054, %v1166
        %v1199 = vadd.f32 %v1055, %v1167
        %v1200 = vadd.f32 %v1056, %v1168
        %v1201 = vadd.f32 %v1057, %v1169
        %v1202 = vadd.f32 %v1058, %v1170
        %v1203 = vadd.f32 %v1059, %v1171
        %v1204 = vadd.f32 %v1060, %v1172
        %v1205 = vadd.f32 %v1061, %v1173
        %v1206 = vadd.f32 %v1062, %v1174
        %v1207 = vadd.f32 %v1063, %v1175
        %v1208 = vadd.f32 %v1064, %v1176
        %v1209 = vadd.f32 %v1065, %v1177
        %v1210 = vadd.f32 %v1066, %v1178
        %v1211 = vadd.f32 %v1067, %v1179
        %v1212 = vadd.f32 %v1068, %v1180
        %v1213 = vadd.f32 %v1069, %v1181
        %v1214 = vadd.f32 %v1070, %v1182
        %1215 = vset.pattern.permute.xlu0 3
        %1216 = vperm.xlu0 %1215, %v766
        %v1217 = vpop.permute.xlu0 %1216
        %1218 = vset.pattern.permute.xlu0 3
        %1219 = vperm.xlu0 %1218, %v767
        %v1220 = vpop.permute.xlu0 %1219
        %1221 = vset.pattern.permute.xlu0 3
        %1222 = vperm.xlu0 %1221, %v768
        %v1223 = vpop.permute.xlu0 %1222
        %1224 = vset.pattern.permute.xlu0 3
        %1225 = vperm.xlu0 %1224, %v769
        %v1226 = vpop.permute.xlu0 %1225
        %1227 = vset.pattern.permute.xlu0 3
        %1228 = vperm.xlu0 %1227, %v770
        %v1229 = vpop.permute.xlu0 %1228
        %1230 = vset.pattern.permute.xlu0 3
        %1231 = vperm.xlu0 %1230, %v771
        %v1232 = vpop.permute.xlu0 %1231
        %1233 = vset.pattern.permute.xlu0 3
        %1234 = vperm.xlu0 %1233, %v772
        %v1235 = vpop.permute.xlu0 %1234
        %1236 = vset.pattern.permute.xlu0 3
        %1237 = vperm.xlu0 %1236, %v773
        %v1238 = vpop.permute.xlu0 %1237
        %1239 = vset.pattern.permute.xlu0 3
        %1240 = vperm.xlu0 %1239, %v774
        %v1241 = vpop.permute.xlu0 %1240
        %1242 = vset.pattern.permute.xlu0 3
        %1243 = vperm.xlu0 %1242, %v775
        %v1244 = vpop.permute.xlu0 %1243
        %1245 = vset.pattern.permute.xlu0 3
        %1246 = vperm.xlu0 %1245, %v776
        %v1247 = vpop.permute.xlu0 %1246
        %1248 = vset.pattern.permute.xlu0 3
        %1249 = vperm.xlu0 %1248, %v777
        %v1250 = vpop.permute.xlu0 %1249
        %1251 = vset.pattern.permute.xlu0 3
        %1252 = vperm.xlu0 %1251, %v778
        %v1253 = vpop.permute.xlu0 %1252
        %1254 = vset.pattern.permute.xlu0 3
        %1255 = vperm.xlu0 %1254, %v779
        %v1256 = vpop.permute.xlu0 %1255
        %1257 = vset.pattern.permute.xlu0 3
        %1258 = vperm.xlu0 %1257, %v780
        %v1259 = vpop.permute.xlu0 %1258
        %1260 = vset.pattern.permute.xlu0 3
        %1261 = vperm.xlu0 %1260, %v781
        %v1262 = vpop.permute.xlu0 %1261
        %vm1263 = vcmp.eq.s32.totalorder %v1217, %v540
        %vm1264 = vcmp.eq.s32.totalorder %v1217, %v782
        %vm1265 = vcmp.eq.s32.totalorder %v1220, %v540
        %vm1266 = vcmp.eq.s32.totalorder %v1220, %v782
        %vm1267 = vcmp.eq.s32.totalorder %v1223, %v540
        %vm1268 = vcmp.eq.s32.totalorder %v1223, %v782
        %vm1269 = vcmp.eq.s32.totalorder %v1226, %v540
        %vm1270 = vcmp.eq.s32.totalorder %v1226, %v782
        %vm1271 = vcmp.eq.s32.totalorder %v1229, %v540
        %vm1272 = vcmp.eq.s32.totalorder %v1229, %v782
        %vm1273 = vcmp.eq.s32.totalorder %v1232, %v540
        %vm1274 = vcmp.eq.s32.totalorder %v1232, %v782
        %vm1275 = vcmp.eq.s32.totalorder %v1235, %v540
        %vm1276 = vcmp.eq.s32.totalorder %v1235, %v782
        %vm1277 = vcmp.eq.s32.totalorder %v1238, %v540
        %vm1278 = vcmp.eq.s32.totalorder %v1238, %v782
        %vm1279 = vcmp.eq.s32.totalorder %v1241, %v540
        %vm1280 = vcmp.eq.s32.totalorder %v1241, %v782
        %vm1281 = vcmp.eq.s32.totalorder %v1244, %v540
        %vm1282 = vcmp.eq.s32.totalorder %v1244, %v782
        %vm1283 = vcmp.eq.s32.totalorder %v1247, %v540
        %vm1284 = vcmp.eq.s32.totalorder %v1247, %v782
        %vm1285 = vcmp.eq.s32.totalorder %v1250, %v540
        %vm1286 = vcmp.eq.s32.totalorder %v1250, %v782
        %vm1287 = vcmp.eq.s32.totalorder %v1253, %v540
        %vm1288 = vcmp.eq.s32.totalorder %v1253, %v782
        %vm1289 = vcmp.eq.s32.totalorder %v1256, %v540
        %vm1290 = vcmp.eq.s32.totalorder %v1256, %v782
        %vm1291 = vcmp.eq.s32.totalorder %v1259, %v540
        %vm1292 = vcmp.eq.s32.totalorder %v1259, %v782
        %vm1293 = vcmp.eq.s32.totalorder %v1262, %v540
        %vm1294 = vcmp.eq.s32.totalorder %v1262, %v782
        %v1295 = vsel %vm1263, 1.0, 0.0
        %v1296 = vsel %vm1264, 1.0, 0.0
        %v1297 = vsel %vm1265, 1.0, 0.0
        %v1298 = vsel %vm1266, 1.0, 0.0
        %v1299 = vsel %vm1267, 1.0, 0.0
        %v1300 = vsel %vm1268, 1.0, 0.0
        %v1301 = vsel %vm1269, 1.0, 0.0
        %v1302 = vsel %vm1270, 1.0, 0.0
        %v1303 = vsel %vm1271, 1.0, 0.0
        %v1304 = vsel %vm1272, 1.0, 0.0
        %v1305 = vsel %vm1273, 1.0, 0.0
        %v1306 = vsel %vm1274, 1.0, 0.0
        %v1307 = vsel %vm1275, 1.0, 0.0
        %v1308 = vsel %vm1276, 1.0, 0.0
        %v1309 = vsel %vm1277, 1.0, 0.0
        %v1310 = vsel %vm1278, 1.0, 0.0
        %v1311 = vsel %vm1279, 1.0, 0.0
        %v1312 = vsel %vm1280, 1.0, 0.0
        %v1313 = vsel %vm1281, 1.0, 0.0
        %v1314 = vsel %vm1282, 1.0, 0.0
        %v1315 = vsel %vm1283, 1.0, 0.0
        %v1316 = vsel %vm1284, 1.0, 0.0
        %v1317 = vsel %vm1285, 1.0, 0.0
        %v1318 = vsel %vm1286, 1.0, 0.0
        %v1319 = vsel %vm1287, 1.0, 0.0
        %v1320 = vsel %vm1288, 1.0, 0.0
        %v1321 = vsel %vm1289, 1.0, 0.0
        %v1322 = vsel %vm1290, 1.0, 0.0
        %v1323 = vsel %vm1291, 1.0, 0.0
        %v1324 = vsel %vm1292, 1.0, 0.0
        %v1325 = vsel %vm1293, 1.0, 0.0
        %v1326 = vsel %vm1294, 1.0, 0.0
        %v1327 = vadd.f32 %v1183, %v1295
        %v1328 = vadd.f32 %v1184, %v1296
        %v1329 = vadd.f32 %v1185, %v1297
        %v1330 = vadd.f32 %v1186, %v1298
        %v1331 = vadd.f32 %v1187, %v1299
        %v1332 = vadd.f32 %v1188, %v1300
        %v1333 = vadd.f32 %v1189, %v1301
        %v1334 = vadd.f32 %v1190, %v1302
        %v1335 = vadd.f32 %v1191, %v1303
        %v1336 = vadd.f32 %v1192, %v1304
        %v1337 = vadd.f32 %v1193, %v1305
        %v1338 = vadd.f32 %v1194, %v1306
        %v1339 = vadd.f32 %v1195, %v1307
        %v1340 = vadd.f32 %v1196, %v1308
        %v1341 = vadd.f32 %v1197, %v1309
        %v1342 = vadd.f32 %v1198, %v1310
        %v1343 = vadd.f32 %v1199, %v1311
        %v1344 = vadd.f32 %v1200, %v1312
        %v1345 = vadd.f32 %v1201, %v1313
        %v1346 = vadd.f32 %v1202, %v1314
        %v1347 = vadd.f32 %v1203, %v1315
        %v1348 = vadd.f32 %v1204, %v1316
        %v1349 = vadd.f32 %v1205, %v1317
        %v1350 = vadd.f32 %v1206, %v1318
        %v1351 = vadd.f32 %v1207, %v1319
        %v1352 = vadd.f32 %v1208, %v1320
        %v1353 = vadd.f32 %v1209, %v1321
        %v1354 = vadd.f32 %v1210, %v1322
        %v1355 = vadd.f32 %v1211, %v1323
        %v1356 = vadd.f32 %v1212, %v1324
        %v1357 = vadd.f32 %v1213, %v1325
        %v1358 = vadd.f32 %v1214, %v1326
        %1359 = vset.pattern.permute.xlu0 4
        %1360 = vperm.xlu0 %1359, %v766
        %v1361 = vpop.permute.xlu0 %1360
        %1362 = vset.pattern.permute.xlu0 4
        %1363 = vperm.xlu0 %1362, %v767
        %v1364 = vpop.permute.xlu0 %1363
        %1365 = vset.pattern.permute.xlu0 4
        %1366 = vperm.xlu0 %1365, %v768
        %v1367 = vpop.permute.xlu0 %1366
        %1368 = vset.pattern.permute.xlu0 4
        %1369 = vperm.xlu0 %1368, %v769
        %v1370 = vpop.permute.xlu0 %1369
        %1371 = vset.pattern.permute.xlu0 4
        %1372 = vperm.xlu0 %1371, %v770
        %v1373 = vpop.permute.xlu0 %1372
        %1374 = vset.pattern.permute.xlu0 4
        %1375 = vperm.xlu0 %1374, %v771
        %v1376 = vpop.permute.xlu0 %1375
        %1377 = vset.pattern.permute.xlu0 4
        %1378 = vperm.xlu0 %1377, %v772
        %v1379 = vpop.permute.xlu0 %1378
        %1380 = vset.pattern.permute.xlu0 4
        %1381 = vperm.xlu0 %1380, %v773
        %v1382 = vpop.permute.xlu0 %1381
        %1383 = vset.pattern.permute.xlu0 4
        %1384 = vperm.xlu0 %1383, %v774
        %v1385 = vpop.permute.xlu0 %1384
        %1386 = vset.pattern.permute.xlu0 4
        %1387 = vperm.xlu0 %1386, %v775
        %v1388 = vpop.permute.xlu0 %1387
        %1389 = vset.pattern.permute.xlu0 4
        %1390 = vperm.xlu0 %1389, %v776
        %v1391 = vpop.permute.xlu0 %1390
        %1392 = vset.pattern.permute.xlu0 4
        %1393 = vperm.xlu0 %1392, %v777
        %v1394 = vpop.permute.xlu0 %1393
        %1395 = vset.pattern.permute.xlu0 4
        %1396 = vperm.xlu0 %1395, %v778
        %v1397 = vpop.permute.xlu0 %1396
        %1398 = vset.pattern.permute.xlu0 4
        %1399 = vperm.xlu0 %1398, %v779
        %v1400 = vpop.permute.xlu0 %1399
        %1401 = vset.pattern.permute.xlu0 4
        %1402 = vperm.xlu0 %1401, %v780
        %v1403 = vpop.permute.xlu0 %1402
        %1404 = vset.pattern.permute.xlu0 4
        %1405 = vperm.xlu0 %1404, %v781
        %v1406 = vpop.permute.xlu0 %1405
        %vm1407 = vcmp.eq.s32.totalorder %v1361, %v540
        %vm1408 = vcmp.eq.s32.totalorder %v1361, %v782
        %vm1409 = vcmp.eq.s32.totalorder %v1364, %v540
        %vm1410 = vcmp.eq.s32.totalorder %v1364, %v782
        %vm1411 = vcmp.eq.s32.totalorder %v1367, %v540
        %vm1412 = vcmp.eq.s32.totalorder %v1367, %v782
        %vm1413 = vcmp.eq.s32.totalorder %v1370, %v540
        %vm1414 = vcmp.eq.s32.totalorder %v1370, %v782
        %vm1415 = vcmp.eq.s32.totalorder %v1373, %v540
        %vm1416 = vcmp.eq.s32.totalorder %v1373, %v782
        %vm1417 = vcmp.eq.s32.totalorder %v1376, %v540
        %vm1418 = vcmp.eq.s32.totalorder %v1376, %v782
        %vm1419 = vcmp.eq.s32.totalorder %v1379, %v540
        %vm1420 = vcmp.eq.s32.totalorder %v1379, %v782
        %vm1421 = vcmp.eq.s32.totalorder %v1382, %v540
        %vm1422 = vcmp.eq.s32.totalorder %v1382, %v782
        %vm1423 = vcmp.eq.s32.totalorder %v1385, %v540
        %vm1424 = vcmp.eq.s32.totalorder %v1385, %v782
        %vm1425 = vcmp.eq.s32.totalorder %v1388, %v540
        %vm1426 = vcmp.eq.s32.totalorder %v1388, %v782
        %vm1427 = vcmp.eq.s32.totalorder %v1391, %v540
        %vm1428 = vcmp.eq.s32.totalorder %v1391, %v782
        %vm1429 = vcmp.eq.s32.totalorder %v1394, %v540
        %vm1430 = vcmp.eq.s32.totalorder %v1394, %v782
        %vm1431 = vcmp.eq.s32.totalorder %v1397, %v540
        %vm1432 = vcmp.eq.s32.totalorder %v1397, %v782
        %vm1433 = vcmp.eq.s32.totalorder %v1400, %v540
        %vm1434 = vcmp.eq.s32.totalorder %v1400, %v782
        %vm1435 = vcmp.eq.s32.totalorder %v1403, %v540
        %vm1436 = vcmp.eq.s32.totalorder %v1403, %v782
        %vm1437 = vcmp.eq.s32.totalorder %v1406, %v540
        %vm1438 = vcmp.eq.s32.totalorder %v1406, %v782
        %v1439 = vsel %vm1407, 1.0, 0.0
        %v1440 = vsel %vm1408, 1.0, 0.0
        %v1441 = vsel %vm1409, 1.0, 0.0
        %v1442 = vsel %vm1410, 1.0, 0.0
        %v1443 = vsel %vm1411, 1.0, 0.0
        %v1444 = vsel %vm1412, 1.0, 0.0
        %v1445 = vsel %vm1413, 1.0, 0.0
        %v1446 = vsel %vm1414, 1.0, 0.0
        %v1447 = vsel %vm1415, 1.0, 0.0
        %v1448 = vsel %vm1416, 1.0, 0.0
        %v1449 = vsel %vm1417, 1.0, 0.0
        %v1450 = vsel %vm1418, 1.0, 0.0
        %v1451 = vsel %vm1419, 1.0, 0.0
        %v1452 = vsel %vm1420, 1.0, 0.0
        %v1453 = vsel %vm1421, 1.0, 0.0
        %v1454 = vsel %vm1422, 1.0, 0.0
        %v1455 = vsel %vm1423, 1.0, 0.0
        %v1456 = vsel %vm1424, 1.0, 0.0
        %v1457 = vsel %vm1425, 1.0, 0.0
        %v1458 = vsel %vm1426, 1.0, 0.0
        %v1459 = vsel %vm1427, 1.0, 0.0
        %v1460 = vsel %vm1428, 1.0, 0.0
        %v1461 = vsel %vm1429, 1.0, 0.0
        %v1462 = vsel %vm1430, 1.0, 0.0
        %v1463 = vsel %vm1431, 1.0, 0.0
        %v1464 = vsel %vm1432, 1.0, 0.0
        %v1465 = vsel %vm1433, 1.0, 0.0
        %v1466 = vsel %vm1434, 1.0, 0.0
        %v1467 = vsel %vm1435, 1.0, 0.0
        %v1468 = vsel %vm1436, 1.0, 0.0
        %v1469 = vsel %vm1437, 1.0, 0.0
        %v1470 = vsel %vm1438, 1.0, 0.0
        %v1471 = vadd.f32 %v1327, %v1439
        %v1472 = vadd.f32 %v1328, %v1440
        %v1473 = vadd.f32 %v1329, %v1441
        %v1474 = vadd.f32 %v1330, %v1442
        %v1475 = vadd.f32 %v1331, %v1443
        %v1476 = vadd.f32 %v1332, %v1444
        %v1477 = vadd.f32 %v1333, %v1445
        %v1478 = vadd.f32 %v1334, %v1446
        %v1479 = vadd.f32 %v1335, %v1447
        %v1480 = vadd.f32 %v1336, %v1448
        %v1481 = vadd.f32 %v1337, %v1449
        %v1482 = vadd.f32 %v1338, %v1450
        %v1483 = vadd.f32 %v1339, %v1451
        %v1484 = vadd.f32 %v1340, %v1452
        %v1485 = vadd.f32 %v1341, %v1453
        %v1486 = vadd.f32 %v1342, %v1454
        %v1487 = vadd.f32 %v1343, %v1455
        %v1488 = vadd.f32 %v1344, %v1456
        %v1489 = vadd.f32 %v1345, %v1457
        %v1490 = vadd.f32 %v1346, %v1458
        %v1491 = vadd.f32 %v1347, %v1459
        %v1492 = vadd.f32 %v1348, %v1460
        %v1493 = vadd.f32 %v1349, %v1461
        %v1494 = vadd.f32 %v1350, %v1462
        %v1495 = vadd.f32 %v1351, %v1463
        %v1496 = vadd.f32 %v1352, %v1464
        %v1497 = vadd.f32 %v1353, %v1465
        %v1498 = vadd.f32 %v1354, %v1466
        %v1499 = vadd.f32 %v1355, %v1467
        %v1500 = vadd.f32 %v1356, %v1468
        %v1501 = vadd.f32 %v1357, %v1469
        %v1502 = vadd.f32 %v1358, %v1470
        %1503 = vset.pattern.permute.xlu0 5
        %1504 = vperm.xlu0 %1503, %v766
        %v1505 = vpop.permute.xlu0 %1504
        %1506 = vset.pattern.permute.xlu0 5
        %1507 = vperm.xlu0 %1506, %v767
        %v1508 = vpop.permute.xlu0 %1507
        %1509 = vset.pattern.permute.xlu0 5
        %1510 = vperm.xlu0 %1509, %v768
        %v1511 = vpop.permute.xlu0 %1510
        %1512 = vset.pattern.permute.xlu0 5
        %1513 = vperm.xlu0 %1512, %v769
        %v1514 = vpop.permute.xlu0 %1513
        %1515 = vset.pattern.permute.xlu0 5
        %1516 = vperm.xlu0 %1515, %v770
        %v1517 = vpop.permute.xlu0 %1516
        %1518 = vset.pattern.permute.xlu0 5
        %1519 = vperm.xlu0 %1518, %v771
        %v1520 = vpop.permute.xlu0 %1519
        %1521 = vset.pattern.permute.xlu0 5
        %1522 = vperm.xlu0 %1521, %v772
        %v1523 = vpop.permute.xlu0 %1522
        %1524 = vset.pattern.permute.xlu0 5
        %1525 = vperm.xlu0 %1524, %v773
        %v1526 = vpop.permute.xlu0 %1525
        %1527 = vset.pattern.permute.xlu0 5
        %1528 = vperm.xlu0 %1527, %v774
        %v1529 = vpop.permute.xlu0 %1528
        %1530 = vset.pattern.permute.xlu0 5
        %1531 = vperm.xlu0 %1530, %v775
        %v1532 = vpop.permute.xlu0 %1531
        %1533 = vset.pattern.permute.xlu0 5
        %1534 = vperm.xlu0 %1533, %v776
        %v1535 = vpop.permute.xlu0 %1534
        %1536 = vset.pattern.permute.xlu0 5
        %1537 = vperm.xlu0 %1536, %v777
        %v1538 = vpop.permute.xlu0 %1537
        %1539 = vset.pattern.permute.xlu0 5
        %1540 = vperm.xlu0 %1539, %v778
        %v1541 = vpop.permute.xlu0 %1540
        %1542 = vset.pattern.permute.xlu0 5
        %1543 = vperm.xlu0 %1542, %v779
        %v1544 = vpop.permute.xlu0 %1543
        %1545 = vset.pattern.permute.xlu0 5
        %1546 = vperm.xlu0 %1545, %v780
        %v1547 = vpop.permute.xlu0 %1546
        %1548 = vset.pattern.permute.xlu0 5
        %1549 = vperm.xlu0 %1548, %v781
        %v1550 = vpop.permute.xlu0 %1549
        %vm1551 = vcmp.eq.s32.totalorder %v1505, %v540
        %vm1552 = vcmp.eq.s32.totalorder %v1505, %v782
        %vm1553 = vcmp.eq.s32.totalorder %v1508, %v540
        %vm1554 = vcmp.eq.s32.totalorder %v1508, %v782
        %vm1555 = vcmp.eq.s32.totalorder %v1511, %v540
        %vm1556 = vcmp.eq.s32.totalorder %v1511, %v782
        %vm1557 = vcmp.eq.s32.totalorder %v1514, %v540
        %vm1558 = vcmp.eq.s32.totalorder %v1514, %v782
        %vm1559 = vcmp.eq.s32.totalorder %v1517, %v540
        %vm1560 = vcmp.eq.s32.totalorder %v1517, %v782
        %vm1561 = vcmp.eq.s32.totalorder %v1520, %v540
        %vm1562 = vcmp.eq.s32.totalorder %v1520, %v782
        %vm1563 = vcmp.eq.s32.totalorder %v1523, %v540
        %vm1564 = vcmp.eq.s32.totalorder %v1523, %v782
        %vm1565 = vcmp.eq.s32.totalorder %v1526, %v540
        %vm1566 = vcmp.eq.s32.totalorder %v1526, %v782
        %vm1567 = vcmp.eq.s32.totalorder %v1529, %v540
        %vm1568 = vcmp.eq.s32.totalorder %v1529, %v782
        %vm1569 = vcmp.eq.s32.totalorder %v1532, %v540
        %vm1570 = vcmp.eq.s32.totalorder %v1532, %v782
        %vm1571 = vcmp.eq.s32.totalorder %v1535, %v540
        %vm1572 = vcmp.eq.s32.totalorder %v1535, %v782
        %vm1573 = vcmp.eq.s32.totalorder %v1538, %v540
        %vm1574 = vcmp.eq.s32.totalorder %v1538, %v782
        %vm1575 = vcmp.eq.s32.totalorder %v1541, %v540
        %vm1576 = vcmp.eq.s32.totalorder %v1541, %v782
        %vm1577 = vcmp.eq.s32.totalorder %v1544, %v540
        %vm1578 = vcmp.eq.s32.totalorder %v1544, %v782
        %vm1579 = vcmp.eq.s32.totalorder %v1547, %v540
        %vm1580 = vcmp.eq.s32.totalorder %v1547, %v782
        %vm1581 = vcmp.eq.s32.totalorder %v1550, %v540
        %vm1582 = vcmp.eq.s32.totalorder %v1550, %v782
        %v1583 = vsel %vm1551, 1.0, 0.0
        %v1584 = vsel %vm1552, 1.0, 0.0
        %v1585 = vsel %vm1553, 1.0, 0.0
        %v1586 = vsel %vm1554, 1.0, 0.0
        %v1587 = vsel %vm1555, 1.0, 0.0
        %v1588 = vsel %vm1556, 1.0, 0.0
        %v1589 = vsel %vm1557, 1.0, 0.0
        %v1590 = vsel %vm1558, 1.0, 0.0
        %v1591 = vsel %vm1559, 1.0, 0.0
        %v1592 = vsel %vm1560, 1.0, 0.0
        %v1593 = vsel %vm1561, 1.0, 0.0
        %v1594 = vsel %vm1562, 1.0, 0.0
        %v1595 = vsel %vm1563, 1.0, 0.0
        %v1596 = vsel %vm1564, 1.0, 0.0
        %v1597 = vsel %vm1565, 1.0, 0.0
        %v1598 = vsel %vm1566, 1.0, 0.0
        %v1599 = vsel %vm1567, 1.0, 0.0
        %v1600 = vsel %vm1568, 1.0, 0.0
        %v1601 = vsel %vm1569, 1.0, 0.0
        %v1602 = vsel %vm1570, 1.0, 0.0
        %v1603 = vsel %vm1571, 1.0, 0.0
        %v1604 = vsel %vm1572, 1.0, 0.0
        %v1605 = vsel %vm1573, 1.0, 0.0
        %v1606 = vsel %vm1574, 1.0, 0.0
        %v1607 = vsel %vm1575, 1.0, 0.0
        %v1608 = vsel %vm1576, 1.0, 0.0
        %v1609 = vsel %vm1577, 1.0, 0.0
        %v1610 = vsel %vm1578, 1.0, 0.0
        %v1611 = vsel %vm1579, 1.0, 0.0
        %v1612 = vsel %vm1580, 1.0, 0.0
        %v1613 = vsel %vm1581, 1.0, 0.0
        %v1614 = vsel %vm1582, 1.0, 0.0
        %v1615 = vadd.f32 %v1471, %v1583
        %v1616 = vadd.f32 %v1472, %v1584
        %v1617 = vadd.f32 %v1473, %v1585
        %v1618 = vadd.f32 %v1474, %v1586
        %v1619 = vadd.f32 %v1475, %v1587
        %v1620 = vadd.f32 %v1476, %v1588
        %v1621 = vadd.f32 %v1477, %v1589
        %v1622 = vadd.f32 %v1478, %v1590
        %v1623 = vadd.f32 %v1479, %v1591
        %v1624 = vadd.f32 %v1480, %v1592
        %v1625 = vadd.f32 %v1481, %v1593
        %v1626 = vadd.f32 %v1482, %v1594
        %v1627 = vadd.f32 %v1483, %v1595
        %v1628 = vadd.f32 %v1484, %v1596
        %v1629 = vadd.f32 %v1485, %v1597
        %v1630 = vadd.f32 %v1486, %v1598
        %v1631 = vadd.f32 %v1487, %v1599
        %v1632 = vadd.f32 %v1488, %v1600
        %v1633 = vadd.f32 %v1489, %v1601
        %v1634 = vadd.f32 %v1490, %v1602
        %v1635 = vadd.f32 %v1491, %v1603
        %v1636 = vadd.f32 %v1492, %v1604
        %v1637 = vadd.f32 %v1493, %v1605
        %v1638 = vadd.f32 %v1494, %v1606
        %v1639 = vadd.f32 %v1495, %v1607
        %v1640 = vadd.f32 %v1496, %v1608
        %v1641 = vadd.f32 %v1497, %v1609
        %v1642 = vadd.f32 %v1498, %v1610
        %v1643 = vadd.f32 %v1499, %v1611
        %v1644 = vadd.f32 %v1500, %v1612
        %v1645 = vadd.f32 %v1501, %v1613
        %v1646 = vadd.f32 %v1502, %v1614
        %1647 = vset.pattern.permute.xlu0 6
        %1648 = vperm.xlu0 %1647, %v766
        %v1649 = vpop.permute.xlu0 %1648
        %1650 = vset.pattern.permute.xlu0 6
        %1651 = vperm.xlu0 %1650, %v767
        %v1652 = vpop.permute.xlu0 %1651
        %1653 = vset.pattern.permute.xlu0 6
        %1654 = vperm.xlu0 %1653, %v768
        %v1655 = vpop.permute.xlu0 %1654
        %1656 = vset.pattern.permute.xlu0 6
        %1657 = vperm.xlu0 %1656, %v769
        %v1658 = vpop.permute.xlu0 %1657
        %1659 = vset.pattern.permute.xlu0 6
        %1660 = vperm.xlu0 %1659, %v770
        %v1661 = vpop.permute.xlu0 %1660
        %1662 = vset.pattern.permute.xlu0 6
        %1663 = vperm.xlu0 %1662, %v771
        %v1664 = vpop.permute.xlu0 %1663
        %1665 = vset.pattern.permute.xlu0 6
        %1666 = vperm.xlu0 %1665, %v772
        %v1667 = vpop.permute.xlu0 %1666
        %1668 = vset.pattern.permute.xlu0 6
        %1669 = vperm.xlu0 %1668, %v773
        %v1670 = vpop.permute.xlu0 %1669
        %1671 = vset.pattern.permute.xlu0 6
        %1672 = vperm.xlu0 %1671, %v774
        %v1673 = vpop.permute.xlu0 %1672
        %1674 = vset.pattern.permute.xlu0 6
        %1675 = vperm.xlu0 %1674, %v775
        %v1676 = vpop.permute.xlu0 %1675
        %1677 = vset.pattern.permute.xlu0 6
        %1678 = vperm.xlu0 %1677, %v776
        %v1679 = vpop.permute.xlu0 %1678
        %1680 = vset.pattern.permute.xlu0 6
        %1681 = vperm.xlu0 %1680, %v777
        %v1682 = vpop.permute.xlu0 %1681
        %1683 = vset.pattern.permute.xlu0 6
        %1684 = vperm.xlu0 %1683, %v778
        %v1685 = vpop.permute.xlu0 %1684
        %1686 = vset.pattern.permute.xlu0 6
        %1687 = vperm.xlu0 %1686, %v779
        %v1688 = vpop.permute.xlu0 %1687
        %1689 = vset.pattern.permute.xlu0 6
        %1690 = vperm.xlu0 %1689, %v780
        %v1691 = vpop.permute.xlu0 %1690
        %1692 = vset.pattern.permute.xlu0 6
        %1693 = vperm.xlu0 %1692, %v781
        %v1694 = vpop.permute.xlu0 %1693
        %vm1695 = vcmp.eq.s32.totalorder %v1649, %v540
        %vm1696 = vcmp.eq.s32.totalorder %v1649, %v782
        %vm1697 = vcmp.eq.s32.totalorder %v1652, %v540
        %vm1698 = vcmp.eq.s32.totalorder %v1652, %v782
        %vm1699 = vcmp.eq.s32.totalorder %v1655, %v540
        %vm1700 = vcmp.eq.s32.totalorder %v1655, %v782
        %vm1701 = vcmp.eq.s32.totalorder %v1658, %v540
        %vm1702 = vcmp.eq.s32.totalorder %v1658, %v782
        %vm1703 = vcmp.eq.s32.totalorder %v1661, %v540
        %vm1704 = vcmp.eq.s32.totalorder %v1661, %v782
        %vm1705 = vcmp.eq.s32.totalorder %v1664, %v540
        %vm1706 = vcmp.eq.s32.totalorder %v1664, %v782
        %vm1707 = vcmp.eq.s32.totalorder %v1667, %v540
        %vm1708 = vcmp.eq.s32.totalorder %v1667, %v782
        %vm1709 = vcmp.eq.s32.totalorder %v1670, %v540
        %vm1710 = vcmp.eq.s32.totalorder %v1670, %v782
        %vm1711 = vcmp.eq.s32.totalorder %v1673, %v540
        %vm1712 = vcmp.eq.s32.totalorder %v1673, %v782
        %vm1713 = vcmp.eq.s32.totalorder %v1676, %v540
        %vm1714 = vcmp.eq.s32.totalorder %v1676, %v782
        %vm1715 = vcmp.eq.s32.totalorder %v1679, %v540
        %vm1716 = vcmp.eq.s32.totalorder %v1679, %v782
        %vm1717 = vcmp.eq.s32.totalorder %v1682, %v540
        %vm1718 = vcmp.eq.s32.totalorder %v1682, %v782
        %vm1719 = vcmp.eq.s32.totalorder %v1685, %v540
        %vm1720 = vcmp.eq.s32.totalorder %v1685, %v782
        %vm1721 = vcmp.eq.s32.totalorder %v1688, %v540
        %vm1722 = vcmp.eq.s32.totalorder %v1688, %v782
        %vm1723 = vcmp.eq.s32.totalorder %v1691, %v540
        %vm1724 = vcmp.eq.s32.totalorder %v1691, %v782
        %vm1725 = vcmp.eq.s32.totalorder %v1694, %v540
        %vm1726 = vcmp.eq.s32.totalorder %v1694, %v782
        %v1727 = vsel %vm1695, 1.0, 0.0
        %v1728 = vsel %vm1696, 1.0, 0.0
        %v1729 = vsel %vm1697, 1.0, 0.0
        %v1730 = vsel %vm1698, 1.0, 0.0
        %v1731 = vsel %vm1699, 1.0, 0.0
        %v1732 = vsel %vm1700, 1.0, 0.0
        %v1733 = vsel %vm1701, 1.0, 0.0
        %v1734 = vsel %vm1702, 1.0, 0.0
        %v1735 = vsel %vm1703, 1.0, 0.0
        %v1736 = vsel %vm1704, 1.0, 0.0
        %v1737 = vsel %vm1705, 1.0, 0.0
        %v1738 = vsel %vm1706, 1.0, 0.0
        %v1739 = vsel %vm1707, 1.0, 0.0
        %v1740 = vsel %vm1708, 1.0, 0.0
        %v1741 = vsel %vm1709, 1.0, 0.0
        %v1742 = vsel %vm1710, 1.0, 0.0
        %v1743 = vsel %vm1711, 1.0, 0.0
        %v1744 = vsel %vm1712, 1.0, 0.0
        %v1745 = vsel %vm1713, 1.0, 0.0
        %v1746 = vsel %vm1714, 1.0, 0.0
        %v1747 = vsel %vm1715, 1.0, 0.0
        %v1748 = vsel %vm1716, 1.0, 0.0
        %v1749 = vsel %vm1717, 1.0, 0.0
        %v1750 = vsel %vm1718, 1.0, 0.0
        %v1751 = vsel %vm1719, 1.0, 0.0
        %v1752 = vsel %vm1720, 1.0, 0.0
        %v1753 = vsel %vm1721, 1.0, 0.0
        %v1754 = vsel %vm1722, 1.0, 0.0
        %v1755 = vsel %vm1723, 1.0, 0.0
        %v1756 = vsel %vm1724, 1.0, 0.0
        %v1757 = vsel %vm1725, 1.0, 0.0
        %v1758 = vsel %vm1726, 1.0, 0.0
        %v1759 = vadd.f32 %v1615, %v1727
        %v1760 = vadd.f32 %v1616, %v1728
        %v1761 = vadd.f32 %v1617, %v1729
        %v1762 = vadd.f32 %v1618, %v1730
        %v1763 = vadd.f32 %v1619, %v1731
        %v1764 = vadd.f32 %v1620, %v1732
        %v1765 = vadd.f32 %v1621, %v1733
        %v1766 = vadd.f32 %v1622, %v1734
        %v1767 = vadd.f32 %v1623, %v1735
        %v1768 = vadd.f32 %v1624, %v1736
        %v1769 = vadd.f32 %v1625, %v1737
        %v1770 = vadd.f32 %v1626, %v1738
        %v1771 = vadd.f32 %v1627, %v1739
        %v1772 = vadd.f32 %v1628, %v1740
        %v1773 = vadd.f32 %v1629, %v1741
        %v1774 = vadd.f32 %v1630, %v1742
        %v1775 = vadd.f32 %v1631, %v1743
        %v1776 = vadd.f32 %v1632, %v1744
        %v1777 = vadd.f32 %v1633, %v1745
        %v1778 = vadd.f32 %v1634, %v1746
        %v1779 = vadd.f32 %v1635, %v1747
        %v1780 = vadd.f32 %v1636, %v1748
        %v1781 = vadd.f32 %v1637, %v1749
        %v1782 = vadd.f32 %v1638, %v1750
        %v1783 = vadd.f32 %v1639, %v1751
        %v1784 = vadd.f32 %v1640, %v1752
        %v1785 = vadd.f32 %v1641, %v1753
        %v1786 = vadd.f32 %v1642, %v1754
        %v1787 = vadd.f32 %v1643, %v1755
        %v1788 = vadd.f32 %v1644, %v1756
        %v1789 = vadd.f32 %v1645, %v1757
        %v1790 = vadd.f32 %v1646, %v1758
        %1791 = vset.pattern.permute.xlu0 7
        %1792 = vperm.xlu0 %1791, %v766
        %v1793 = vpop.permute.xlu0 %1792
        %1794 = vset.pattern.permute.xlu0 7
        %1795 = vperm.xlu0 %1794, %v767
        %v1796 = vpop.permute.xlu0 %1795
        %1797 = vset.pattern.permute.xlu0 7
        %1798 = vperm.xlu0 %1797, %v768
        %v1799 = vpop.permute.xlu0 %1798
        %1800 = vset.pattern.permute.xlu0 7
        %1801 = vperm.xlu0 %1800, %v769
        %v1802 = vpop.permute.xlu0 %1801
        %1803 = vset.pattern.permute.xlu0 7
        %1804 = vperm.xlu0 %1803, %v770
        %v1805 = vpop.permute.xlu0 %1804
        %1806 = vset.pattern.permute.xlu0 7
        %1807 = vperm.xlu0 %1806, %v771
        %v1808 = vpop.permute.xlu0 %1807
        %1809 = vset.pattern.permute.xlu0 7
        %1810 = vperm.xlu0 %1809, %v772
        %v1811 = vpop.permute.xlu0 %1810
        %1812 = vset.pattern.permute.xlu0 7
        %1813 = vperm.xlu0 %1812, %v773
        %v1814 = vpop.permute.xlu0 %1813
        %1815 = vset.pattern.permute.xlu0 7
        %1816 = vperm.xlu0 %1815, %v774
        %v1817 = vpop.permute.xlu0 %1816
        %1818 = vset.pattern.permute.xlu0 7
        %1819 = vperm.xlu0 %1818, %v775
        %v1820 = vpop.permute.xlu0 %1819
        %1821 = vset.pattern.permute.xlu0 7
        %1822 = vperm.xlu0 %1821, %v776
        %v1823 = vpop.permute.xlu0 %1822
        %1824 = vset.pattern.permute.xlu0 7
        %1825 = vperm.xlu0 %1824, %v777
        %v1826 = vpop.permute.xlu0 %1825
        %1827 = vset.pattern.permute.xlu0 7
        %1828 = vperm.xlu0 %1827, %v778
        %v1829 = vpop.permute.xlu0 %1828
        %1830 = vset.pattern.permute.xlu0 7
        %1831 = vperm.xlu0 %1830, %v779
        %v1832 = vpop.permute.xlu0 %1831
        %1833 = vset.pattern.permute.xlu0 7
        %1834 = vperm.xlu0 %1833, %v780
        %v1835 = vpop.permute.xlu0 %1834
        %1836 = vset.pattern.permute.xlu0 7
        %1837 = vperm.xlu0 %1836, %v781
        %v1838 = vpop.permute.xlu0 %1837
        %vm1839 = vcmp.eq.s32.totalorder %v1793, %v540
        %vm1840 = vcmp.eq.s32.totalorder %v1793, %v782
        %vm1841 = vcmp.eq.s32.totalorder %v1796, %v540
        %vm1842 = vcmp.eq.s32.totalorder %v1796, %v782
        %vm1843 = vcmp.eq.s32.totalorder %v1799, %v540
        %vm1844 = vcmp.eq.s32.totalorder %v1799, %v782
        %vm1845 = vcmp.eq.s32.totalorder %v1802, %v540
        %vm1846 = vcmp.eq.s32.totalorder %v1802, %v782
        %vm1847 = vcmp.eq.s32.totalorder %v1805, %v540
        %vm1848 = vcmp.eq.s32.totalorder %v1805, %v782
        %vm1849 = vcmp.eq.s32.totalorder %v1808, %v540
        %vm1850 = vcmp.eq.s32.totalorder %v1808, %v782
        %vm1851 = vcmp.eq.s32.totalorder %v1811, %v540
        %vm1852 = vcmp.eq.s32.totalorder %v1811, %v782
        %vm1853 = vcmp.eq.s32.totalorder %v1814, %v540
        %vm1854 = vcmp.eq.s32.totalorder %v1814, %v782
        %vm1855 = vcmp.eq.s32.totalorder %v1817, %v540
        %vm1856 = vcmp.eq.s32.totalorder %v1817, %v782
        %vm1857 = vcmp.eq.s32.totalorder %v1820, %v540
        %vm1858 = vcmp.eq.s32.totalorder %v1820, %v782
        %vm1859 = vcmp.eq.s32.totalorder %v1823, %v540
        %vm1860 = vcmp.eq.s32.totalorder %v1823, %v782
        %vm1861 = vcmp.eq.s32.totalorder %v1826, %v540
        %vm1862 = vcmp.eq.s32.totalorder %v1826, %v782
        %vm1863 = vcmp.eq.s32.totalorder %v1829, %v540
        %vm1864 = vcmp.eq.s32.totalorder %v1829, %v782
        %vm1865 = vcmp.eq.s32.totalorder %v1832, %v540
        %vm1866 = vcmp.eq.s32.totalorder %v1832, %v782
        %vm1867 = vcmp.eq.s32.totalorder %v1835, %v540
        %vm1868 = vcmp.eq.s32.totalorder %v1835, %v782
        %vm1869 = vcmp.eq.s32.totalorder %v1838, %v540
        %vm1870 = vcmp.eq.s32.totalorder %v1838, %v782
        %v1871 = vsel %vm1839, 1.0, 0.0
        %v1872 = vsel %vm1840, 1.0, 0.0
        %v1873 = vsel %vm1841, 1.0, 0.0
        %v1874 = vsel %vm1842, 1.0, 0.0
        %v1875 = vsel %vm1843, 1.0, 0.0
        %v1876 = vsel %vm1844, 1.0, 0.0
        %v1877 = vsel %vm1845, 1.0, 0.0
        %v1878 = vsel %vm1846, 1.0, 0.0
        %v1879 = vsel %vm1847, 1.0, 0.0
        %v1880 = vsel %vm1848, 1.0, 0.0
        %v1881 = vsel %vm1849, 1.0, 0.0
        %v1882 = vsel %vm1850, 1.0, 0.0
        %v1883 = vsel %vm1851, 1.0, 0.0
        %v1884 = vsel %vm1852, 1.0, 0.0
        %v1885 = vsel %vm1853, 1.0, 0.0
        %v1886 = vsel %vm1854, 1.0, 0.0
        %v1887 = vsel %vm1855, 1.0, 0.0
        %v1888 = vsel %vm1856, 1.0, 0.0
        %v1889 = vsel %vm1857, 1.0, 0.0
        %v1890 = vsel %vm1858, 1.0, 0.0
        %v1891 = vsel %vm1859, 1.0, 0.0
        %v1892 = vsel %vm1860, 1.0, 0.0
        %v1893 = vsel %vm1861, 1.0, 0.0
        %v1894 = vsel %vm1862, 1.0, 0.0
        %v1895 = vsel %vm1863, 1.0, 0.0
        %v1896 = vsel %vm1864, 1.0, 0.0
        %v1897 = vsel %vm1865, 1.0, 0.0
        %v1898 = vsel %vm1866, 1.0, 0.0
        %v1899 = vsel %vm1867, 1.0, 0.0
        %v1900 = vsel %vm1868, 1.0, 0.0
        %v1901 = vsel %vm1869, 1.0, 0.0
        %v1902 = vsel %vm1870, 1.0, 0.0
        %v1903 = vadd.f32 %v1759, %v1871
        %v1904 = vadd.f32 %v1760, %v1872
        %v1905 = vadd.f32 %v1761, %v1873
        %v1906 = vadd.f32 %v1762, %v1874
        %v1907 = vadd.f32 %v1763, %v1875
        %v1908 = vadd.f32 %v1764, %v1876
        %v1909 = vadd.f32 %v1765, %v1877
        %v1910 = vadd.f32 %v1766, %v1878
        %v1911 = vadd.f32 %v1767, %v1879
        %v1912 = vadd.f32 %v1768, %v1880
        %v1913 = vadd.f32 %v1769, %v1881
        %v1914 = vadd.f32 %v1770, %v1882
        %v1915 = vadd.f32 %v1771, %v1883
        %v1916 = vadd.f32 %v1772, %v1884
        %v1917 = vadd.f32 %v1773, %v1885
        %v1918 = vadd.f32 %v1774, %v1886
        %v1919 = vadd.f32 %v1775, %v1887
        %v1920 = vadd.f32 %v1776, %v1888
        %v1921 = vadd.f32 %v1777, %v1889
        %v1922 = vadd.f32 %v1778, %v1890
        %v1923 = vadd.f32 %v1779, %v1891
        %v1924 = vadd.f32 %v1780, %v1892
        %v1925 = vadd.f32 %v1781, %v1893
        %v1926 = vadd.f32 %v1782, %v1894
        %v1927 = vadd.f32 %v1783, %v1895
        %v1928 = vadd.f32 %v1784, %v1896
        %v1929 = vadd.f32 %v1785, %v1897
        %v1930 = vadd.f32 %v1786, %v1898
        %v1931 = vadd.f32 %v1787, %v1899
        %v1932 = vadd.f32 %v1788, %v1900
        %v1933 = vadd.f32 %v1789, %v1901
        %v1934 = vadd.f32 %v1790, %v1902
        %v1935 = vpack.c.bf16 %v1905, %v1903
        %v1936 = vpack.c.bf16 %v1906, %v1904
        %v1937 = vpack.c.bf16 %v1909, %v1907
        %v1938 = vpack.c.bf16 %v1910, %v1908
        %v1939 = vpack.c.bf16 %v1913, %v1911
        %v1940 = vpack.c.bf16 %v1914, %v1912
        %v1941 = vpack.c.bf16 %v1917, %v1915
        %v1942 = vpack.c.bf16 %v1918, %v1916
        %v1943 = vpack.c.bf16 %v1921, %v1919
        %v1944 = vpack.c.bf16 %v1922, %v1920
        %v1945 = vpack.c.bf16 %v1925, %v1923
        %v1946 = vpack.c.bf16 %v1926, %v1924
        %v1947 = vpack.c.bf16 %v1929, %v1927
        %v1948 = vpack.c.bf16 %v1930, %v1928
        %v1949 = vpack.c.bf16 %v1933, %v1931
        %v1950 = vpack.c.bf16 %v1934, %v1932
        %v1951 = vld [vmem:[%s7] sm:$0xff]
        %v1952 = vld [vmem:[%s7 + $0x8] sm:$0xff]
        %v1953 = vld [vmem:[%s7 + $0x10] sm:$0xff]
        %v1954 = vld [vmem:[%s7 + $0x18] sm:$0xff]
        %v1955 = vld [vmem:[%s7 + $0x20] sm:$0xff]
        %v1956 = vld [vmem:[%s7 + $0x28] sm:$0xff]
        %v1957 = vld [vmem:[%s7 + $0x30] sm:$0xff]
        %v1958 = vld [vmem:[%s7 + $0x38] sm:$0xff]
        %v1959 = vld [vmem:[%s7 + $0x40] sm:$0xff]
        %v1960 = vld [vmem:[%s7 + $0x48] sm:$0xff]
        %v1961 = vld [vmem:[%s7 + $0x50] sm:$0xff]
        %v1962 = vld [vmem:[%s7 + $0x58] sm:$0xff]
        %v1963 = vld [vmem:[%s7 + $0x60] sm:$0xff]
        %v1964 = vld [vmem:[%s7 + $0x68] sm:$0xff]
        %v1965 = vld [vmem:[%s7 + $0x70] sm:$0xff]
        %v1966 = vld [vmem:[%s7 + $0x78] sm:$0xff]
        %v1967 = vld [vmem:[%s7 + $0x80] sm:$0xff]
        %v1968 = vld [vmem:[%s7 + $0x88] sm:$0xff]
        %v1969 = vld [vmem:[%s7 + $0x90] sm:$0xff]
        %v1970 = vld [vmem:[%s7 + $0x98] sm:$0xff]
        %v1971 = vld [vmem:[%s7 + $0xa0] sm:$0xff]
        %v1972 = vld [vmem:[%s7 + $0xa8] sm:$0xff]
        %v1973 = vld [vmem:[%s7 + $0xb0] sm:$0xff]
        %v1974 = vld [vmem:[%s7 + $0xb8] sm:$0xff]
        %v1975 = vld [vmem:[%s7 + $0xc0] sm:$0xff]
        %v1976 = vld [vmem:[%s7 + $0xc8] sm:$0xff]
        %v1977 = vld [vmem:[%s7 + $0xd0] sm:$0xff]
        %v1978 = vld [vmem:[%s7 + $0xd8] sm:$0xff]
        %v1979 = vld [vmem:[%s7 + $0xe0] sm:$0xff]
        %v1980 = vld [vmem:[%s7 + $0xe8] sm:$0xff]
        %v1981 = vld [vmem:[%s7 + $0xf0] sm:$0xff]
        %v1982 = vld [vmem:[%s7 + $0xf8] sm:$0xff]
        %v1983 = vpack.c.bf16 %v1952, %v1951
        %v1984 = vpack.c.bf16 %v1954, %v1953
        %v1985 = vpack.c.bf16 %v1956, %v1955
        %v1986 = vpack.c.bf16 %v1958, %v1957
        %v1987 = vpack.c.bf16 %v1960, %v1959
        %v1988 = vpack.c.bf16 %v1962, %v1961
        %v1989 = vpack.c.bf16 %v1964, %v1963
        %v1990 = vpack.c.bf16 %v1966, %v1965
        %v1991 = vpack.c.bf16 %v1968, %v1967
        %v1992 = vpack.c.bf16 %v1970, %v1969
        %v1993 = vpack.c.bf16 %v1972, %v1971
        %v1994 = vpack.c.bf16 %v1974, %v1973
        %v1995 = vpack.c.bf16 %v1976, %v1975
        %v1996 = vpack.c.bf16 %v1978, %v1977
        %v1997 = vpack.c.bf16 %v1980, %v1979
        %v1998 = vpack.c.bf16 %v1982, %v1981
        %1999 = vmatprep.subr.bf16.mxu0 0
        %2000 = vmatpush1.bf16.msra.mxu0 %v1983
        %2001 = vmatprep.subr.bf16.mxu0 0
        %2002 = vmatpush1.bf16.msra.mxu0 %v1984
        %2003 = vmatprep.subr.bf16.mxu0 0
        %2004 = vmatpush1.bf16.msra.mxu0 %v1985
        %2005 = vmatprep.subr.bf16.mxu0 0
        %2006 = vmatpush1.bf16.msra.mxu0 %v1986
        %2007 = vmatprep.subr.bf16.mxu0 0
        %2008 = vmatpush1.bf16.msra.mxu0 %v1987
        %2009 = vmatprep.subr.bf16.mxu0 0
        %2010 = vmatpush1.bf16.msra.mxu0 %v1988
        %2011 = vmatprep.subr.bf16.mxu0 0
        %2012 = vmatpush1.bf16.msra.mxu0 %v1989
        %2013 = vmatprep.subr.bf16.mxu0 0
        %2014 = vmatpush1.bf16.msra.mxu0 %v1990
        %2015 = vmatprep.subr.bf16.mxu0 0
        %2016 = vmatpush1.bf16.msra.mxu0 %v1991
        %2017 = vmatprep.subr.bf16.mxu0 0
        %2018 = vmatpush1.bf16.msra.mxu0 %v1992
        %2019 = vmatprep.subr.bf16.mxu0 0
        %2020 = vmatpush1.bf16.msra.mxu0 %v1993
        %2021 = vmatprep.subr.bf16.mxu0 0
        %2022 = vmatpush1.bf16.msra.mxu0 %v1994
        %2023 = vmatprep.subr.bf16.mxu0 0
        %2024 = vmatpush1.bf16.msra.mxu0 %v1995
        %2025 = vmatprep.subr.bf16.mxu0 0
        %2026 = vmatpush1.bf16.msra.mxu0 %v1996
        %2027 = vmatprep.subr.bf16.mxu0 0
        %2028 = vmatpush1.bf16.msra.mxu0 %v1997
        %2029 = vmatprep.subr.bf16.mxu0 0
        %2030 = vmatpush1.bf16.msra.mxu0 %v1998
        %2031 = vmatprep.mubr.bf16.mxu0 %v1936
        %2032 = vmatmul.mubr.bf16.gmra.mrb[0].mxu0 %v1935
        %v2033 = vpop.f32.mrb[0].mxu0
        %v2034 = vadd.f32 0.0, %v2033
        %v2035 = vpop.f32.mrb[0].mxu0
        %v2036 = vpop.f32.mrb[0].mxu0
        %v2037 = vadd.f32 0.0, %v2036
        %v2038 = vpop.f32.mrb[0].mxu0
        %2039 = vmatprep.mubr.bf16.mxu0 %v1938
        %2040 = vmatmul.mubr.bf16.gmra.mrb[0].mxu0 %v1937
        %v2041 = vpop.f32.mrb[0].mxu0
        %v2042 = vadd.f32 0.0, %v2041
        %v2043 = vpop.f32.mrb[0].mxu0
        %v2044 = vpop.f32.mrb[0].mxu0
        %v2045 = vadd.f32 0.0, %v2044
        %v2046 = vpop.f32.mrb[0].mxu0
        %2047 = vmatprep.mubr.bf16.mxu0 %v1940
        %2048 = vmatmul.mubr.bf16.gmra.mrb[0].mxu0 %v1939
        %v2049 = vpop.f32.mrb[0].mxu0
        %v2050 = vadd.f32 0.0, %v2049
        %v2051 = vpop.f32.mrb[0].mxu0
        %v2052 = vpop.f32.mrb[0].mxu0
        %v2053 = vadd.f32 0.0, %v2052
        %v2054 = vpop.f32.mrb[0].mxu0
        %2055 = vmatprep.mubr.bf16.mxu0 %v1942
        %2056 = vmatmul.mubr.bf16.gmra.mrb[0].mxu0 %v1941
        %v2057 = vpop.f32.mrb[0].mxu0
        %v2058 = vadd.f32 0.0, %v2057
        %v2059 = vpop.f32.mrb[0].mxu0
        %v2060 = vpop.f32.mrb[0].mxu0
        %v2061 = vadd.f32 0.0, %v2060
        %v2062 = vpop.f32.mrb[0].mxu0
        %2063 = vmatprep.mubr.bf16.mxu0 %v1944
        %2064 = vmatmul.mubr.bf16.gmra.mrb[0].mxu0 %v1943
        %v2065 = vpop.f32.mrb[0].mxu0
        %v2066 = vadd.f32 0.0, %v2065
        %v2067 = vpop.f32.mrb[0].mxu0
        %v2068 = vpop.f32.mrb[0].mxu0
        %v2069 = vadd.f32 0.0, %v2068
        %v2070 = vpop.f32.mrb[0].mxu0
        %2071 = vmatprep.mubr.bf16.mxu0 %v1946
        %2072 = vmatmul.mubr.bf16.gmra.mrb[0].mxu0 %v1945
        %v2073 = vpop.f32.mrb[0].mxu0
        %v2074 = vadd.f32 0.0, %v2073
        %v2075 = vpop.f32.mrb[0].mxu0
        %v2076 = vpop.f32.mrb[0].mxu0
        %v2077 = vadd.f32 0.0, %v2076
        %v2078 = vpop.f32.mrb[0].mxu0
        %2079 = vmatprep.mubr.bf16.mxu0 %v1948
        %2080 = vmatmul.mubr.bf16.gmra.mrb[0].mxu0 %v1947
        %v2081 = vpop.f32.mrb[0].mxu0
        %v2082 = vadd.f32 0.0, %v2081
        %v2083 = vpop.f32.mrb[0].mxu0
        %v2084 = vpop.f32.mrb[0].mxu0
        %v2085 = vadd.f32 0.0, %v2084
        %v2086 = vpop.f32.mrb[0].mxu0
        %2087 = vmatprep.mubr.bf16.mxu0 %v1950
        %2088 = vmatmul.mubr.bf16.gmra.mrb[0].mxu0 %v1949
        %v2089 = vpop.f32.mrb[0].mxu0
        %v2090 = vadd.f32 0.0, %v2089
        %v2091 = vpop.f32.mrb[0].mxu0
        %v2092 = vpop.f32.mrb[0].mxu0
        %v2093 = vadd.f32 0.0, %v2092
        %v2094 = vpop.f32.mrb[0].mxu0
        %2095 = vdwg.mxu0
        %v2096 = vld [vmem:[%s370] sm:$0xff]
        %v2097 = vld [vmem:[%s370 + $0x8] sm:$0xff]
        %v2098 = vld [vmem:[%s370 + $0x10] sm:$0xff]
        %v2099 = vld [vmem:[%s370 + $0x18] sm:$0xff]
        %v2100 = vld [vmem:[%s370 + $0x20] sm:$0xff]
        %v2101 = vld [vmem:[%s370 + $0x28] sm:$0xff]
        %v2102 = vld [vmem:[%s370 + $0x30] sm:$0xff]
        %v2103 = vld [vmem:[%s370 + $0x38] sm:$0xff]
        %v2104 = vld [vmem:[%s370 + $0x40] sm:$0xff]
        %v2105 = vld [vmem:[%s370 + $0x48] sm:$0xff]
        %v2106 = vld [vmem:[%s370 + $0x50] sm:$0xff]
        %v2107 = vld [vmem:[%s370 + $0x58] sm:$0xff]
        %v2108 = vld [vmem:[%s370 + $0x60] sm:$0xff]
        %v2109 = vld [vmem:[%s370 + $0x68] sm:$0xff]
        %v2110 = vld [vmem:[%s370 + $0x70] sm:$0xff]
        %v2111 = vld [vmem:[%s370 + $0x78] sm:$0xff]
        %v2112 = vrcp.pop %v2096
        %v2113 = vrcp.pop %v2097
        %v2114 = vrcp.pop %v2098
        %v2115 = vrcp.pop %v2099
        %v2116 = vrcp.pop %v2100
        %v2117 = vrcp.pop %v2101
        %v2118 = vrcp.pop %v2102
        %v2119 = vrcp.pop %v2103
        %v2120 = vrcp.pop %v2104
        %v2121 = vrcp.pop %v2105
        %v2122 = vrcp.pop %v2106
        %v2123 = vrcp.pop %v2107
        %v2124 = vrcp.pop %v2108
        %v2125 = vrcp.pop %v2109
        %v2126 = vrcp.pop %v2110
        %v2127 = vrcp.pop %v2111
        %2129 = vset.pattern.permute.xlu0 0
        %2130 = vperm.xlu0 %2129, %v2112
        %v2131 = vpop.permute.xlu0 %2130
        %2134 = vset.pattern.permute.xlu0 0
        %2135 = vperm.xlu0 %2134, %v2113
        %v2136 = vpop.permute.xlu0 %2135
        %2139 = vset.pattern.permute.xlu0 0
        %2140 = vperm.xlu0 %2139, %v2114
        %v2141 = vpop.permute.xlu0 %2140
        %2144 = vset.pattern.permute.xlu0 0
        %2145 = vperm.xlu0 %2144, %v2115
        %v2146 = vpop.permute.xlu0 %2145
        %2149 = vset.pattern.permute.xlu0 0
        %2150 = vperm.xlu0 %2149, %v2116
        %v2151 = vpop.permute.xlu0 %2150
        %2154 = vset.pattern.permute.xlu0 0
        %2155 = vperm.xlu0 %2154, %v2117
        %v2156 = vpop.permute.xlu0 %2155
        %2159 = vset.pattern.permute.xlu0 0
        %2160 = vperm.xlu0 %2159, %v2118
        %v2161 = vpop.permute.xlu0 %2160
        %2164 = vset.pattern.permute.xlu0 0
        %2165 = vperm.xlu0 %2164, %v2119
        %v2166 = vpop.permute.xlu0 %2165
        %2169 = vset.pattern.permute.xlu0 0
        %2170 = vperm.xlu0 %2169, %v2120
        %v2171 = vpop.permute.xlu0 %2170
        %2174 = vset.pattern.permute.xlu0 0
        %2175 = vperm.xlu0 %2174, %v2121
        %v2176 = vpop.permute.xlu0 %2175
        %2179 = vset.pattern.permute.xlu0 0
        %2180 = vperm.xlu0 %2179, %v2122
        %v2181 = vpop.permute.xlu0 %2180
        %2184 = vset.pattern.permute.xlu0 0
        %2185 = vperm.xlu0 %2184, %v2123
        %v2186 = vpop.permute.xlu0 %2185
        %2189 = vset.pattern.permute.xlu0 0
        %2190 = vperm.xlu0 %2189, %v2124
        %v2191 = vpop.permute.xlu0 %2190
        %2194 = vset.pattern.permute.xlu0 0
        %2195 = vperm.xlu0 %2194, %v2125
        %v2196 = vpop.permute.xlu0 %2195
        %2199 = vset.pattern.permute.xlu0 0
        %2200 = vperm.xlu0 %2199, %v2126
        %v2201 = vpop.permute.xlu0 %2200
        %2204 = vset.pattern.permute.xlu0 0
        %2205 = vperm.xlu0 %2204, %v2127
        %v2206 = vpop.permute.xlu0 %2205
        %v2208 = vmul.f32 %v2034, %v2131
        %v2209 = vmul.f32 %v2037, %v2136
        %v2210 = vmul.f32 %v2042, %v2141
        %v2211 = vmul.f32 %v2045, %v2146
        %v2212 = vmul.f32 %v2050, %v2151
        %v2213 = vmul.f32 %v2053, %v2156
        %v2214 = vmul.f32 %v2058, %v2161
        %v2215 = vmul.f32 %v2061, %v2166
        %v2216 = vmul.f32 %v2066, %v2171
        %v2217 = vmul.f32 %v2069, %v2176
        %v2218 = vmul.f32 %v2074, %v2181
        %v2219 = vmul.f32 %v2077, %v2186
        %v2220 = vmul.f32 %v2082, %v2191
        %v2221 = vmul.f32 %v2085, %v2196
        %v2222 = vmul.f32 %v2090, %v2201
        %v2223 = vmul.f32 %v2093, %v2206
        %v2224 = vadd.f32 %v477, %v704
        %v2225 = vadd.f32 %v480, %v707
        %v2226 = vadd.f32 %v485, %v712
        %v2227 = vadd.f32 %v488, %v715
        %v2228 = vadd.f32 %v493, %v720
        %v2229 = vadd.f32 %v496, %v723
        %v2230 = vadd.f32 %v501, %v728
        %v2231 = vadd.f32 %v504, %v731
        %v2232 = vadd.f32 %v509, %v736
        %v2233 = vadd.f32 %v512, %v739
        %v2234 = vadd.f32 %v517, %v744
        %v2235 = vadd.f32 %v520, %v747
        %v2236 = vadd.f32 %v525, %v752
        %v2237 = vadd.f32 %v528, %v755
        %v2238 = vadd.f32 %v533, %v760
        %v2239 = vadd.f32 %v536, %v763
        %v2240 = vadd.f32 %v2224, %v2208
        %v2241 = vadd.f32 %v2225, %v2209
        %v2242 = vadd.f32 %v2226, %v2210
        %v2243 = vadd.f32 %v2227, %v2211
        %v2244 = vadd.f32 %v2228, %v2212
        %v2245 = vadd.f32 %v2229, %v2213
        %v2246 = vadd.f32 %v2230, %v2214
        %v2247 = vadd.f32 %v2231, %v2215
        %v2248 = vadd.f32 %v2232, %v2216
        %v2249 = vadd.f32 %v2233, %v2217
        %v2250 = vadd.f32 %v2234, %v2218
        %v2251 = vadd.f32 %v2235, %v2219
        %v2252 = vadd.f32 %v2236, %v2220
        %v2253 = vadd.f32 %v2237, %v2221
        %v2254 = vadd.f32 %v2238, %v2222
        %v2255 = vadd.f32 %v2239, %v2223
        %2256 = vst [vmem:[%s347] sm:$0xff] %v2240
        %2257 = vst [vmem:[%s347 + $0x8] sm:$0xff] %v2241
        %2258 = vst [vmem:[%s347 + $0x10] sm:$0xff] %v2242
        %2259 = vst [vmem:[%s347 + $0x18] sm:$0xff] %v2243
        %2260 = vst [vmem:[%s347 + $0x20] sm:$0xff] %v2244
        %2261 = vst [vmem:[%s347 + $0x28] sm:$0xff] %v2245
        %2262 = vst [vmem:[%s347 + $0x30] sm:$0xff] %v2246
        %2263 = vst [vmem:[%s347 + $0x38] sm:$0xff] %v2247
        %2264 = vst [vmem:[%s347 + $0x40] sm:$0xff] %v2248
        %2265 = vst [vmem:[%s347 + $0x48] sm:$0xff] %v2249
        %2266 = vst [vmem:[%s347 + $0x50] sm:$0xff] %v2250
        %2267 = vst [vmem:[%s347 + $0x58] sm:$0xff] %v2251
        %2268 = vst [vmem:[%s347 + $0x60] sm:$0xff] %v2252
        %2269 = vst [vmem:[%s347 + $0x68] sm:$0xff] %v2253
        %2270 = vst [vmem:[%s347 + $0x70] sm:$0xff] %v2254
        %2271 = vst [vmem:[%s347 + $0x78] sm:$0xff] %v2255
        %s2272 = sand.u32 %s218, 1
        %s2273 = scalar_lea.sflag [#allocation3], %s2272
        %s2274 = sand.u32 %s218, 1
        %s2275 = smul.addr %s2274, 128
        %s2276 = scalar_lea.vmem [#allocation2], %s2275
        // Predicated region
        $region53: #{tpu_custom_call.1} parent=51 // pred_check
          %p2277 = pneg %p228
        $region54: #{tpu_custom_call.1} parent=51 // pred_check_branch
          %2279 = sbr.rel (%p2277) target = $region56
        $region55: #{tpu_custom_call.1} parent=51 // pred_region
          %s2280 = smul.u32 16, %s22
          %s2282 = ssub.s32 2048, 2048
          %2283 = vsyncadd %s2273, %s2282
          %s2284 = smul.addr %s2280, 128
          %s2285 = scalar_lea.hbm %s8, %s2284
          %s2286 = sshll.u32 %s2276, 4
          %s2287 = int_to_ptr.vmem [resolvable:$true] %s2286
          %2292 = dma.vmem_to_hbm [thread:$0]  %s2287, 2048, %s2285, %s2273, 128, 128, 8
        $region56: #{tpu_custom_call.1} parent=51 // pred_fallthru
          _
      $region52: #{tpu_custom_call.1} parent=5 // pred_fallthru
        _
      %p2293 = scmp.le.s32.totalorder 2, %s17
      // Predicated region
      $region57: #{tpu_custom_call.1} parent=5 // pred_check
        %p2294 = pneg %p2293
      $region58: #{tpu_custom_call.1} parent=5 // pred_check_branch
        %2296 = sbr.rel (%p2294) target = $region60
      $region59: #{tpu_custom_call.1} parent=5 // pred_region
        %s2297 = ssub.s32 %s17, 2
        // Predicated region
        $region61: #{tpu_custom_call.1} parent=59 // pred_check
          %p2298 = pneg %p234
        $region62: #{tpu_custom_call.1} parent=59 // pred_check_branch
          %2300 = sbr.rel (%p2298) target = $region64
        $region63: #{tpu_custom_call.1} parent=59 // pred_region
          %s2301 = sand.u32 %s219, 1
          %s2302 = scalar_lea.sflag [#allocation3], %s2301
          %s2303 = sand.u32 %s219, 1
          %s2304 = smul.addr %s2303, 128
          %s2305 = scalar_lea.vmem [#allocation2], %s2304
          %2306 = dma.done %s2302, 2048
        $region64: #{tpu_custom_call.1} parent=59 // pred_fallthru
          _
      $region60: #{tpu_custom_call.1} parent=5 // pred_fallthru
        _
    $region6: #{tpu_custom_call.1} parent=1 // loop_footer
      %s21 = sadd.s32 1, %s17
    $region7: #{tpu_custom_call.1} parent=1 // loop_footer_branch
      %16 = sbr.rel target = $region3
    $region8: #{tpu_custom_call.1} parent=1 // loop_exit
      _
    %2307 = vsyncpa [#allocation3], 1
    %s2308 = scalar_lea.sflag [#allocation3], 1
    %2309 = vsyncpa %s2308, 1

</llo_original>
